<compile_context>
chip_gen: v5e
topology: v5e:2x2
jax: 0.10.0
libtpu: 0.0.40
codegen_flags: <defaults>
</compile_context>

<pallas_src>
import math

import jax
import jax.numpy as jnp
from jax.experimental import pallas as pl
from jax.experimental.pallas import tpu as pltpu

_C1 = 0.01 ** 2
_C2 = 0.03 ** 2
_WIN = 11
_SIGMA = 1.5
_NEG10_OVER_LN10 = -10.0 / math.log(10.0)   # -10*log10(x) == _NEG10_OVER_LN10 * ln(x)


def _gaussian_window(win, sigma):
    x = jnp.arange(win, dtype=jnp.float32)
    g = jnp.exp(-((x - win // 2) ** 2) / (2.0 * sigma ** 2))
    return g / jnp.sum(g)


def _gaussian_band_matrix(size, win=_WIN, sigma=_SIGMA):
    """Symmetric banded G such that G @ X @ G == zero-padded depthwise Gaussian conv2d."""
    g = _gaussian_window(win, sigma)
    idx = jnp.arange(size)
    off = idx[None, :] - idx[:, None] + win // 2
    valid = (off >= 0) & (off < win)
    return jnp.where(valid, g[jnp.clip(off, 0, win - 1)], 0.0).astype(jnp.float32)


def _iqa_kernel(g_ref, img1_ref, img2_ref, mask_ref, out_ref, fin_ref):
    C, H, W = img1_ref.shape                 # leading image dim squeezed by BlockSpec
    CH = C * H
    CW = C * W
    inv_npix = 1.0 / float(C * H * W)

    x1 = img1_ref[...].reshape(CH, W)        # (C*H, W): channel slabs stacked along rows
    x2 = img2_ref[...].reshape(CH, W)
    m = mask_ref[...]                        # (H, W) single-channel mask
    G = g_ref[...]                           # (H, H) symmetric Gaussian band matrix

    # ---------------- PSNR / weighted-PSNR (clamped images, torch parity) -----
    d = jnp.clip(x2, 0.0, 1.0) - jnp.clip(x1, 0.0, 1.0)
    sq = d * d                               # (C*H, W)
    msum = jnp.sum(m)
    inv_cm = 1.0 / (float(C) * msum)         # mask.repeat(1,3,1,1) folded in; 0-mask -> NaN (torch parity)
    mse = jnp.sum(sq) * inv_npix
    wmse = jnp.sum(sq.reshape(C, H, W) * m) * inv_cm
    psnr = _NEG10_OVER_LN10 * jnp.log(mse)          # == 20*log10(1/rmse); mse==0 -> +inf (torch parity)
    wpsnr = _NEG10_OVER_LN10 * jnp.log(wmse)

    # ---------------- SSIM: two flat, weight-stationary matmuls ---------------
    # (SSIM uses the UNCLIPPED images, matching the torch reference.)
    # Write the five filter inputs straight into the (5*C*H, W) scratch LHS
    # (no concatenate copy pass).
    fin_ref[pl.ds(0 * CH, CH), :] = x1
    fin_ref[pl.ds(1 * CH, CH), :] = x2
    fin_ref[pl.ds(2 * CH, CH), :] = x1 * x1
    fin_ref[pl.ds(3 * CH, CH), :] = x2 * x2
    fin_ref[pl.ds(4 * CH, CH), :] = x1 * x2

    # Zero-padded depthwise 11x11 Gaussian == G @ X @ G per slab.
    # 1) Filter along W for all 5*C slabs in ONE flat matmul (G pushed once).
    y = jnp.dot(fin_ref[...], G, preferred_element_type=jnp.float32)     # (5*C*H, W)
    # 2) Re-orient the slabs once (XLU minor-dim transpose) and filter along H
    #    with a second flat matmul: yT @ G == (G @ y)T since G is symmetric.
    #    All downstream maps stay in the transposed (W, H) orientation.
    yt = jnp.transpose(y.reshape(5 * C, H, W), (0, 2, 1)).reshape(5 * CW, H)
    filt_t = jnp.dot(yt, G, preferred_element_type=jnp.float32)          # (5*C*W, H)

    k = CW
    mu1 = filt_t[0 * k:1 * k]
    mu2 = filt_t[1 * k:2 * k]
    e11 = filt_t[2 * k:3 * k]
    e22 = filt_t[3 * k:4 * k]
    e12 = filt_t[4 * k:5 * k]

    mu1_sq = mu1 * mu1
    mu2_sq = mu2 * mu2
    mu1_mu2 = mu1 * mu2
    sigma1_sq = e11 - mu1_sq
    sigma2_sq = e22 - mu2_sq
    sigma12 = e12 - mu1_mu2

    num = (2.0 * mu1_mu2 + _C1) * (2.0 * sigma12 + _C2)
    den = (mu1_sq + mu2_sq + _C1) * (sigma1_sq + sigma2_sq + _C2)
    ssim_map = num / den                     # (C*W, H); exact divide (review: approx recip bias)

    ssim = jnp.sum(ssim_map) * inv_npix
    # Weighted SSIM: only the (H, W) mask is transposed to match the map layout.
    wssim = jnp.sum(ssim_map.reshape(C, W, H) * m.T) * inv_cm

    # ---------------- pack the 6 metric values into one lane-dense row --------
    lane = jax.lax.broadcasted_iota(jnp.int32, out_ref.shape, 2)
    packed = jnp.where(lane == 0, psnr, 0.0)
    packed = jnp.where(lane == 1, wpsnr, packed)
    packed = jnp.where(lane == 2, ssim, packed)
    packed = jnp.where(lane == 3, wssim, packed)
    # lane 4: lpips (needs a pretrained AlexNet/VGG perceptual net -> left 0)
    # lane 5: niqe  (the original forward hard-codes 0)
    out_ref[...] = packed


def batch_iqa_forward(img1, img2, mask, average=True):
    """JAX/Pallas equivalent of batch_iqa.forward.

    img1, img2: (N, C, H, W) float32 in [0, 1];  mask: (N, 1, H, W) float32.
    Returns [psnr, weighted_psnr, ssim, weighted_ssim, lpips, niqe]
    (batch sums, divided by N when average=True).
    """
    N, C, H, W = img1.shape
    assert H == W, "kernel assumes square images (single separable band matrix)"
    assert mask.shape == (N, 1, H, W)

    G = _gaussian_band_matrix(H)

    # Scoped-VMEM limit from the per-image block footprint (floor = default
    # scoped limit, cap below v7x's 64 MiB physical VMEM).
    per_img = C * H * W * 4
    block_bytes = (2 * 2 * per_img          # img1/img2 blocks, double-buffered
                   + 2 * H * W * 4          # mask block, double-buffered
                   + 2 * H * H * 4          # Gaussian band matrix, double-buffered
                   + 4 * 5 * per_img        # fin scratch + y + yT + filt_t
                   + 8 * per_img)           # SSIM statistics / map temporaries
    vmem_limit = int(min(max(2 * block_bytes, 32 * 2 ** 20), 56 * 2 ** 20))

    img_spec = pl.BlockSpec((None, C, H, W), lambda i: (i, 0, 0, 0))
    out = pl.pallas_call(
        _iqa_kernel,
        out_shape=jax.ShapeDtypeStruct((N, 1, 128), jnp.float32),
        grid=(N,),                                                  # one image per step
        in_specs=[
            pl.BlockSpec((H, H), lambda i: (0, 0)),                 # Gaussian band matrix
            img_spec,                                               # img1
            img_spec,                                               # img2
            pl.BlockSpec((None, None, H, W), lambda i: (i, 0, 0, 0)),  # 1-channel mask
        ],
        out_specs=pl.BlockSpec((1, 1, 128), lambda i: (i, 0, 0)),
        scratch_shapes=[pltpu.VMEM((5 * C * H, W), jnp.float32)],   # flat matmul LHS
        compiler_params=pltpu.CompilerParams(
            dimension_semantics=("parallel",),                      # images are independent
            vmem_limit_bytes=vmem_limit),
    )(G, img1.astype(jnp.float32), img2.astype(jnp.float32),
      mask.astype(jnp.float32))

    sums = jnp.sum(out[:, 0, :6], axis=0)
    # TODO(synk): LPIPS requires a pretrained AlexNet/VGG perceptual network (no
    # deterministic in-script equivalent); its slot (index 4) is left at 0.
    if average:
        sums = sums / jnp.float32(N)
    return [sums[i] for i in range(6)]


if __name__ == "__main__":
    key = jax.random.PRNGKey(0)
    k1, k2, k3 = jax.random.split(key, 3)
    N, C, H, W = 2, 3, 16, 16
    img1 = jax.random.uniform(k1, (N, C, H, W), dtype=jnp.float32)
    img2 = jnp.clip(
        img1 + 0.1 * jax.random.normal(k2, (N, C, H, W), dtype=jnp.float32), 0.0, 1.0
    )
    mask = (jax.random.uniform(k3, (N, 1, H, W)) > 0.3).astype(jnp.float32)

    iqa = batch_iqa_forward(img1, img2, mask, average=True)
    jax.block_until_ready(jnp.stack(iqa))
    print("KERNEL_OK")
</pallas_src>

<mosaic_0001>
module attributes {stable_mosaic.version = 11 : i64} {
  func.func @_iqa_kernel(%arg0: i32, %arg1: memref<16x16xf32, #tpu.memory_space<vmem>>, %arg2: memref<1x3x16x16xf32, #tpu.memory_space<vmem>>, %arg3: memref<1x3x16x16xf32, #tpu.memory_space<vmem>>, %arg4: memref<1x1x16x16xf32, #tpu.memory_space<vmem>>, %arg5: memref<1x1x128xf32, #tpu.memory_space<vmem>>, %arg6: memref<240x16xf32, #tpu.memory_space<vmem>>) attributes {dimension_semantics = [#tpu.dimension_semantics<parallel>], iteration_bounds = array<i64: 2>, scalar_prefetch = 0 : i64, scratch_operands = 1 : i64, tpu.core_type = #tpu.core_type<tc>, window_params = [{pipeline_mode = #tpu.pipeline_mode<synchronous>, transform_indices = @transform_0, window_bounds = array<i64: 16, 16>}, {transform_indices = @transform_1, window_bounds = array<i64: 1, 3, 16, 16>}, {transform_indices = @transform_2, window_bounds = array<i64: 1, 3, 16, 16>}, {transform_indices = @transform_3, window_bounds = array<i64: 1, 1, 16, 16>}, {transform_indices = @transform_4, window_bounds = array<i64: 1, 1, 128>}]} {
    %c0 = arith.constant 0 : index
    %c0_0 = arith.constant 0 : index
    %c0_1 = arith.constant 0 : index
    %c0_2 = arith.constant 0 : index
    %0 = vector.load %arg2[%c0, %c0_0, %c0_1, %c0_2] : memref<1x3x16x16xf32, #tpu.memory_space<vmem>>, vector<1x3x16x16xf32>
    %1 = vector.shape_cast %0 : vector<1x3x16x16xf32> to vector<3x16x16xf32>
    %2 = vector.shape_cast %1 : vector<3x16x16xf32> to vector<48x16xf32>
    %c0_3 = arith.constant 0 : index
    %c0_4 = arith.constant 0 : index
    %c0_5 = arith.constant 0 : index
    %c0_6 = arith.constant 0 : index
    %3 = vector.load %arg3[%c0_3, %c0_4, %c0_5, %c0_6] : memref<1x3x16x16xf32, #tpu.memory_space<vmem>>, vector<1x3x16x16xf32>
    %4 = vector.shape_cast %3 : vector<1x3x16x16xf32> to vector<3x16x16xf32>
    %5 = vector.shape_cast %4 : vector<3x16x16xf32> to vector<48x16xf32>
    %c0_7 = arith.constant 0 : index
    %c0_8 = arith.constant 0 : index
    %c0_9 = arith.constant 0 : index
    %c0_10 = arith.constant 0 : index
    %6 = vector.load %arg4[%c0_7, %c0_8, %c0_9, %c0_10] : memref<1x1x16x16xf32, #tpu.memory_space<vmem>>, vector<1x1x16x16xf32>
    %7 = vector.shape_cast %6 : vector<1x1x16x16xf32> to vector<16x16xf32>
    %c0_11 = arith.constant 0 : index
    %c0_12 = arith.constant 0 : index
    %8 = vector.load %arg1[%c0_11, %c0_12] : memref<16x16xf32, #tpu.memory_space<vmem>>, vector<16x16xf32>
    %cst = arith.constant 0.000000e+00 : f32
    %cst_13 = arith.constant 1.000000e+00 : f32
    %9 = vector.broadcast %cst : f32 to vector<48x16xf32>
    %10 = arith.maximumf %9, %5 : vector<48x16xf32>
    %11 = vector.broadcast %cst_13 : f32 to vector<48x16xf32>
    %12 = arith.minimumf %11, %10 : vector<48x16xf32>
    %cst_14 = arith.constant 0.000000e+00 : f32
    %cst_15 = arith.constant 1.000000e+00 : f32
    %13 = vector.broadcast %cst_14 : f32 to vector<48x16xf32>
    %14 = arith.maximumf %13, %2 : vector<48x16xf32>
    %15 = vector.broadcast %cst_15 : f32 to vector<48x16xf32>
    %16 = arith.minimumf %15, %14 : vector<48x16xf32>
    %17 = arith.subf %12, %16 : vector<48x16xf32>
    %18 = arith.mulf %17, %17 : vector<48x16xf32>
    %19 = vector.shape_cast %7 : vector<16x16xf32> to vector<1x16x16xf32>
    %cst_16 = arith.constant dense<0.000000e+00> : vector<1xf32>
    %20 = vector.multi_reduction <add>, %19, %cst_16 [1, 2] : vector<1x16x16xf32> to vector<1xf32>
    %21 = vector.shape_cast %20 : vector<1xf32> to vector<1x1x1xf32>
    %22 = vector.extract %21[0, 0, 0] : f32 from vector<1x1x1xf32>
    %cst_17 = arith.constant 3.000000e+00 : f32
    %23 = arith.mulf %cst_17, %22 : f32
    %cst_18 = arith.constant 1.000000e+00 : f32
    %24 = arith.divf %cst_18, %23 : f32
    %25 = vector.shape_cast %18 : vector<48x16xf32> to vector<1x48x16xf32>
    %cst_19 = arith.constant dense<0.000000e+00> : vector<1xf32>
    %26 = vector.multi_reduction <add>, %25, %cst_19 [1, 2] : vector<1x48x16xf32> to vector<1xf32>
    %27 = vector.shape_cast %26 : vector<1xf32> to vector<1x1x1xf32>
    %28 = vector.extract %27[0, 0, 0] : f32 from vector<1x1x1xf32>
    %cst_20 = arith.constant 0.00130208337 : f32
    %29 = arith.mulf %28, %cst_20 : f32
    %30 = vector.shape_cast %18 : vector<48x16xf32> to vector<3x16x16xf32>
    %31 = vector.shape_cast %7 : vector<16x16xf32> to vector<1x16x16xf32>
    %32 = vector.broadcast %31 : vector<1x16x16xf32> to vector<3x16x16xf32>
    %33 = arith.mulf %30, %32 : vector<3x16x16xf32>
    %34 = vector.shape_cast %33 : vector<3x16x16xf32> to vector<1x3x16x16xf32>
    %cst_21 = arith.constant dense<0.000000e+00> : vector<1xf32>
    %35 = vector.multi_reduction <add>, %34, %cst_21 [1, 2, 3] : vector<1x3x16x16xf32> to vector<1xf32>
    %36 = vector.shape_cast %35 : vector<1xf32> to vector<1x1x1x1xf32>
    %37 = vector.extract %36[0, 0, 0, 0] : f32 from vector<1x1x1x1xf32>
    %38 = arith.mulf %37, %24 : f32
    %39 = math.log %29 : f32
    %cst_22 = arith.constant -4.34294462 : f32
    %40 = arith.mulf %cst_22, %39 : f32
    %41 = math.log %38 : f32
    %cst_23 = arith.constant -4.34294462 : f32
    %42 = arith.mulf %cst_23, %41 : f32
    %c0_24 = arith.constant 0 : index
    %c0_25 = arith.constant 0 : index
    %43 = vector.load %arg6[%c0_24, %c0_25] : memref<240x16xf32, #tpu.memory_space<vmem>>, vector<48x16xf32>
    tpu.vector_store %arg6[%c0_24, %c0_25], %2 {strides = array<i32>} : memref<240x16xf32, #tpu.memory_space<vmem>>, vector<48x16xf32>,
    %c48 = arith.constant 48 : index
    %c0_26 = arith.constant 0 : index
    %44 = vector.load %arg6[%c48, %c0_26] : memref<240x16xf32, #tpu.memory_space<vmem>>, vector<48x16xf32>
    tpu.vector_store %arg6[%c48, %c0_26], %5 {strides = array<i32>} : memref<240x16xf32, #tpu.memory_space<vmem>>, vector<48x16xf32>,
    %45 = arith.mulf %2, %2 : vector<48x16xf32>
    %c96 = arith.constant 96 : index
    %c0_27 = arith.constant 0 : index
    %46 = vector.load %arg6[%c96, %c0_27] : memref<240x16xf32, #tpu.memory_space<vmem>>, vector<48x16xf32>
    tpu.vector_store %arg6[%c96, %c0_27], %45 {strides = array<i32>} : memref<240x16xf32, #tpu.memory_space<vmem>>, vector<48x16xf32>,
    %47 = arith.mulf %5, %5 : vector<48x16xf32>
    %c144 = arith.constant 144 : index
    %c0_28 = arith.constant 0 : index
    %48 = vector.load %arg6[%c144, %c0_28] : memref<240x16xf32, #tpu.memory_space<vmem>>, vector<48x16xf32>
    tpu.vector_store %arg6[%c144, %c0_28], %47 {strides = array<i32>} : memref<240x16xf32, #tpu.memory_space<vmem>>, vector<48x16xf32>,
    %49 = arith.mulf %2, %5 : vector<48x16xf32>
    %c192 = arith.constant 192 : index
    %c0_29 = arith.constant 0 : index
    %50 = vector.load %arg6[%c192, %c0_29] : memref<240x16xf32, #tpu.memory_space<vmem>>, vector<48x16xf32>
    tpu.vector_store %arg6[%c192, %c0_29], %49 {strides = array<i32>} : memref<240x16xf32, #tpu.memory_space<vmem>>, vector<48x16xf32>,
    %c0_30 = arith.constant 0 : index
    %c0_31 = arith.constant 0 : index
    %51 = vector.load %arg6[%c0_30, %c0_31] : memref<240x16xf32, #tpu.memory_space<vmem>>, vector<240x16xf32>
    %cst_32 = arith.constant dense<0.000000e+00> : vector<240x16xf32>
    %52 = tpu.matmul %51, %8, %cst_32 {dimension_numbers = #tpu.dot_dimension_numbers<[1], [0], [0], [1], [0, 0, 1, 1], [], []>} : vector<240x16xf32>, vector<16x16xf32>, vector<240x16xf32> -> vector<240x16xf32>
    %53 = vector.shape_cast %52 : vector<240x16xf32> to vector<15x16x16xf32>
    %54 = tpu.transpose %53, [0, 2, 1] : vector<15x16x16xf32> -> vector<15x16x16xf32>
    %55 = vector.shape_cast %54 : vector<15x16x16xf32> to vector<240x16xf32>
    %cst_33 = arith.constant dense<0.000000e+00> : vector<240x16xf32>
    %56 = tpu.matmul %55, %8, %cst_33 {dimension_numbers = #tpu.dot_dimension_numbers<[1], [0], [0], [1], [0, 0, 1, 1], [], []>} : vector<240x16xf32>, vector<16x16xf32>, vector<240x16xf32> -> vector<240x16xf32>
    %57 = vector.extract_strided_slice %56 {offsets = [0, 0], sizes = [48, 16], strides = [1, 1]} : vector<240x16xf32> to vector<48x16xf32>
    %58 = vector.extract_strided_slice %56 {offsets = [48, 0], sizes = [48, 16], strides = [1, 1]} : vector<240x16xf32> to vector<48x16xf32>
    %59 = vector.extract_strided_slice %56 {offsets = [96, 0], sizes = [48, 16], strides = [1, 1]} : vector<240x16xf32> to vector<48x16xf32>
    %60 = vector.extract_strided_slice %56 {offsets = [144, 0], sizes = [48, 16], strides = [1, 1]} : vector<240x16xf32> to vector<48x16xf32>
    %61 = vector.extract_strided_slice %56 {offsets = [192, 0], sizes = [48, 16], strides = [1, 1]} : vector<240x16xf32> to vector<48x16xf32>
    %62 = arith.mulf %57, %57 : vector<48x16xf32>
    %63 = arith.mulf %58, %58 : vector<48x16xf32>
    %64 = arith.mulf %57, %58 : vector<48x16xf32>
    %65 = arith.subf %59, %62 : vector<48x16xf32>
    %66 = arith.subf %60, %63 : vector<48x16xf32>
    %67 = arith.subf %61, %64 : vector<48x16xf32>
    %cst_34 = arith.constant 2.000000e+00 : f32
    %68 = vector.broadcast %cst_34 : f32 to vector<48x16xf32>
    %69 = arith.mulf %68, %64 : vector<48x16xf32>
    %cst_35 = arith.constant 9.99999974E-5 : f32
    %70 = vector.broadcast %cst_35 : f32 to vector<48x16xf32>
    %71 = arith.addf %69, %70 : vector<48x16xf32>
    %cst_36 = arith.constant 2.000000e+00 : f32
    %72 = vector.broadcast %cst_36 : f32 to vector<48x16xf32>
    %73 = arith.mulf %72, %67 : vector<48x16xf32>
    %cst_37 = arith.constant 8.99999984E-4 : f32
    %74 = vector.broadcast %cst_37 : f32 to vector<48x16xf32>
    %75 = arith.addf %73, %74 : vector<48x16xf32>
    %76 = arith.mulf %71, %75 : vector<48x16xf32>
    %77 = arith.addf %62, %63 : vector<48x16xf32>
    %cst_38 = arith.constant 9.99999974E-5 : f32
    %78 = vector.broadcast %cst_38 : f32 to vector<48x16xf32>
    %79 = arith.addf %77, %78 : vector<48x16xf32>
    %80 = arith.addf %65, %66 : vector<48x16xf32>
    %cst_39 = arith.constant 8.99999984E-4 : f32
    %81 = vector.broadcast %cst_39 : f32 to vector<48x16xf32>
    %82 = arith.addf %80, %81 : vector<48x16xf32>
    %83 = arith.mulf %79, %82 : vector<48x16xf32>
    %84 = arith.divf %76, %83 : vector<48x16xf32>
    %85 = vector.shape_cast %84 : vector<48x16xf32> to vector<1x48x16xf32>
    %cst_40 = arith.constant dense<0.000000e+00> : vector<1xf32>
    %86 = vector.multi_reduction <add>, %85, %cst_40 [1, 2] : vector<1x48x16xf32> to vector<1xf32>
    %87 = vector.shape_cast %86 : vector<1xf32> to vector<1x1x1xf32>
    %88 = vector.extract %87[0, 0, 0] : f32 from vector<1x1x1xf32>
    %cst_41 = arith.constant 0.00130208337 : f32
    %89 = arith.mulf %88, %cst_41 : f32
    %90 = vector.shape_cast %84 : vector<48x16xf32> to vector<3x16x16xf32>
    %91 = tpu.transpose %7, [1, 0] : vector<16x16xf32> -> vector<16x16xf32>
    %92 = vector.shape_cast %91 : vector<16x16xf32> to vector<1x16x16xf32>
    %93 = vector.broadcast %92 : vector<1x16x16xf32> to vector<3x16x16xf32>
    %94 = arith.mulf %90, %93 : vector<3x16x16xf32>
    %95 = vector.shape_cast %94 : vector<3x16x16xf32> to vector<1x3x16x16xf32>
    %cst_42 = arith.constant dense<0.000000e+00> : vector<1xf32>
    %96 = vector.multi_reduction <add>, %95, %cst_42 [1, 2, 3] : vector<1x3x16x16xf32> to vector<1xf32>
    %97 = vector.shape_cast %96 : vector<1xf32> to vector<1x1x1x1xf32>
    %98 = vector.extract %97[0, 0, 0, 0] : f32 from vector<1x1x1x1xf32>
    %99 = arith.mulf %98, %24 : f32
    %100 = tpu.iota {dimensions = array<i32: 2>} : vector<1x1x128xi32>
    %c0_i32 = arith.constant 0 : i32
    %101 = vector.broadcast %c0_i32 : i32 to vector<1x1x128xi32>
    %102 = arith.cmpi eq, %100, %101 : vector<1x1x128xi32>
    %cst_43 = arith.constant 0.000000e+00 : f32
    %103 = vector.broadcast %40 : f32 to vector<1x1x128xf32>
    %104 = vector.broadcast %cst_43 : f32 to vector<1x1x128xf32>
    %105 = arith.select %102, %103, %104 : vector<1x1x128xi1>, vector<1x1x128xf32>
    %c1_i32 = arith.constant 1 : i32
    %106 = vector.broadcast %c1_i32 : i32 to vector<1x1x128xi32>
    %107 = arith.cmpi eq, %100, %106 : vector<1x1x128xi32>
    %108 = vector.broadcast %42 : f32 to vector<1x1x128xf32>
    %109 = arith.select %107, %108, %105 : vector<1x1x128xi1>, vector<1x1x128xf32>
    %c2_i32 = arith.constant 2 : i32
    %110 = vector.broadcast %c2_i32 : i32 to vector<1x1x128xi32>
    %111 = arith.cmpi eq, %100, %110 : vector<1x1x128xi32>
    %112 = vector.broadcast %89 : f32 to vector<1x1x128xf32>
    %113 = arith.select %111, %112, %109 : vector<1x1x128xi1>, vector<1x1x128xf32>
    %c3_i32 = arith.constant 3 : i32
    %114 = vector.broadcast %c3_i32 : i32 to vector<1x1x128xi32>
    %115 = arith.cmpi eq, %100, %114 : vector<1x1x128xi32>
    %116 = vector.broadcast %99 : f32 to vector<1x1x128xf32>
    %117 = arith.select %115, %116, %113 : vector<1x1x128xi1>, vector<1x1x128xf32>
    %c0_44 = arith.constant 0 : index
    %c0_45 = arith.constant 0 : index
    %c0_46 = arith.constant 0 : index
    %118 = vector.load %arg5[%c0_44, %c0_45, %c0_46] : memref<1x1x128xf32, #tpu.memory_space<vmem>>, vector<1x1x128xf32>
    tpu.vector_store %arg5[%c0_44, %c0_45, %c0_46], %117 {strides = array<i32>} : memref<1x1x128xf32, #tpu.memory_space<vmem>>, vector<1x1x128xf32>,
    return
  }
  func.func @transform_0(%arg0: i32) -> (i32, i32) {
    %c0_i32 = arith.constant 0 : i32
    %c0_i32_0 = arith.constant 0 : i32
    %c0_i32_1 = arith.constant 0 : i32
    return %c0_i32, %c0_i32_0 : i32, i32
  }
  func.func @transform_1(%arg0: i32) -> (i32, i32, i32, i32) {
    %c0_i32 = arith.constant 0 : i32
    %c0_i32_0 = arith.constant 0 : i32
    %c0_i32_1 = arith.constant 0 : i32
    %c0_i32_2 = arith.constant 0 : i32
    return %arg0, %c0_i32, %c0_i32_0, %c0_i32_1 : i32, i32, i32, i32
  }
  func.func @transform_2(%arg0: i32) -> (i32, i32, i32, i32) {
    %c0_i32 = arith.constant 0 : i32
    %c0_i32_0 = arith.constant 0 : i32
    %c0_i32_1 = arith.constant 0 : i32
    %c0_i32_2 = arith.constant 0 : i32
    return %arg0, %c0_i32, %c0_i32_0, %c0_i32_1 : i32, i32, i32, i32
  }
  func.func @transform_3(%arg0: i32) -> (i32, i32, i32, i32) {
    %c0_i32 = arith.constant 0 : i32
    %c0_i32_0 = arith.constant 0 : i32
    %c0_i32_1 = arith.constant 0 : i32
    %c0_i32_2 = arith.constant 0 : i32
    return %arg0, %c0_i32, %c0_i32_0, %c0_i32_1 : i32, i32, i32, i32
  }
  func.func @transform_4(%arg0: i32) -> (i32, i32, i32) {
    %c0_i32 = arith.constant 0 : i32
    %c0_i32_0 = arith.constant 0 : i32
    %c0_i32_1 = arith.constant 0 : i32
    return %arg0, %c0_i32, %c0_i32_0 : i32, i32, i32
  }
}

</mosaic_0001>

<llo_original>
// kernel: tpu_custom_call.1
$region0: #{tpu_custom_call.1}
  #allocation0 [shape = 'u32[]', space=smem, size = 0x4, offset = 0x4, fixed_abs, tag = 'smem constant byte address 0x4 - core index']
  #allocation1 [shape = 'u32[72,128]{1,0:T(1,128)}', space=vmem, size = 0x9000, scoped, tag = 'internal scratch']
  #allocation2 [shape = 'f32[240,16]{1,0:T(8,128)}', space=vmem, size = 0x1e000, scoped, tag = 'scratch operand']
  %s0 = inlined_call_operand.hbm [shape: f32[16,16], index: 0, kind: input, shape index: {}]
  %s1 = inlined_call_operand.hbm [shape: f32[2,3,16,16], index: 1, kind: input, shape index: {}]
  %s2 = inlined_call_operand.hbm [shape: f32[2,3,16,16], index: 2, kind: input, shape index: {}]
  %s3 = inlined_call_operand.hbm [shape: f32[2,1,16,16], index: 3, kind: input, shape index: {}]
  %s4 = inlined_call_operand.hbm [shape: f32[2,1,128], index: 4, kind: output, shape index: {}]
  %s5 = sld [smem:[#allocation0]]
  $region65: #{tpu_custom_call.1} parent=0
    _
  %s7 = ssub.s32 1, %s5
  %s8 = scalar_select 0, %s7, %s5
  $region1: #{tpu_custom_call.1} parent=0
    #allocation3 [shape = 'u8[8192]{0}', space=vmem, size = 0x2000, scoped, tag = 'input window, operand 0, single buffered']
    #allocation4 [shape = 's32[2]{0}', space=sflag, size = 0x8, scoped, tag = 'scoped memory for tpu_custom_call.1']
    #allocation5 [shape = 's32[2]{0}', space=sflag, size = 0x8, scoped, tag = 'scoped memory for tpu_custom_call.1']
    #allocation6 [shape = 'u8[49152]{0}', space=vmem, size = 0xc000, scoped, tag = 'input window, operand 1']
    #allocation7 [shape = 's32[2]{0}', space=sflag, size = 0x8, scoped, tag = 'scoped memory for tpu_custom_call.1']
    #allocation8 [shape = 'u8[49152]{0}', space=vmem, size = 0xc000, scoped, tag = 'input window, operand 2']
    #allocation9 [shape = 'u8[16384]{0}', space=vmem, size = 0x4000, scoped, tag = 'input window, operand 3']
    #allocation10 [shape = 's32[2]{0}', space=sflag, size = 0x8, scoped, tag = 'scoped memory for tpu_custom_call.1']
    #allocation11 [shape = 'u8[1024]{0}', space=vmem, size = 0x400, scoped, tag = 'output window, operand 0']
    %9 = vsyncpa [#allocation4], 0
    %10 = vsyncpa [#allocation7], 0
    %s11 = scalar_lea.sflag [#allocation7], 1
    %12 = vsyncpa %s11, 0
    %13 = vsyncpa [#allocation10], 0
    %s14 = scalar_lea.sflag [#allocation10], 1
    %15 = vsyncpa %s14, 0
    %16 = vsyncpa [#allocation5], 0
    %s17 = scalar_lea.sflag [#allocation5], 1
    %18 = vsyncpa %s17, 0
    loop: start=0, step=1, limit=4
    $region2: #{tpu_custom_call.1} parent=1 // loop_pre_header
      _
    $region3: #{tpu_custom_call.1} parent=1 // loop_header
      %s20 = sphi 0, %s24
      %p21 = scmp.ge.s32.totalorder %s20, 4
      %s28 = sphi 0, %s28
      %s30 = sphi 0, %s28
      %s31 = sphi 0, %s30
      %s45 = sphi 0, %s31
      %s51 = sphi 0, %s53
      %s54 = sphi 0, %s51
      %s55 = sphi 0, %s54
      %s71 = sphi 0, %s55
      %s77 = sphi 0, %s79
      %s80 = sphi 0, %s77
      %s81 = sphi 0, %s80
      %s97 = sphi 0, %s81
      %s103 = sphi 0, %s105
      %s106 = sphi 0, %s103
      %s107 = sphi 0, %s106
      %s123 = sphi 0, %s107
      %s129 = sphi 0, %s131
      %s132 = sphi 0, %s129
      %s133 = sphi 0, %s132
      %s149 = sphi 0, %s133
    $region4: #{tpu_custom_call.1} parent=1 // loop_header_branch
      %23 = sbr.rel (%p21) target = $region8
    $region5: #{tpu_custom_call.1} parent=1 // loop_body
      %s25 = ssub.s32 %s20, 1
      %s26 = ssub.s32 %s20, 2
      %s27 = sadd.s32 %s20, 1
      %s29 = sadd.s32 %s28, 1
      %p32 = scmp.eq.s32.totalorder %s20, 1
      %p33 = scmp.ne.s32.totalorder %s28, %s30
      %p34 = scmp.eq.s32.totalorder %s20, 0
      %p35 = por %p33, %p34
      %p36 = scmp.ne.s32.totalorder %s28, %s30
      %p37 = scmp.eq.s32.totalorder %s25, 1
      %p38 = por %p36, %p37
      %p39 = scmp.ne.s32.totalorder %s30, %s31
      %p40 = scmp.eq.s32.totalorder %s25, 0
      %p41 = por %p39, %p40
      %p42 = scmp.ne.s32.totalorder %s30, %s31
      %p43 = scmp.eq.s32.totalorder %s26, 1
      %p44 = por %p42, %p43
      %p46 = scmp.ne.s32.totalorder %s31, %s45
      %p47 = scmp.eq.s32.totalorder %s26, 0
      %p48 = por %p46, %p47
      %s49 = ssub.s32 %s20, %s27
      %p50 = scmp.eq.s32.totalorder %s49, 0
      %s52 = sadd.s32 %s51, 1
      %s53 = scalar_select %p50, %s51, %s52
      %p56 = pneg %p50
      %p57 = scmp.eq.s32.totalorder %s20, 1
      %p58 = por %p56, %p57
      %p59 = scmp.ne.s32.totalorder %s51, %s54
      %p60 = scmp.eq.s32.totalorder %s20, 0
      %p61 = por %p59, %p60
      %p62 = scmp.ne.s32.totalorder %s51, %s54
      %p63 = scmp.eq.s32.totalorder %s25, 1
      %p64 = por %p62, %p63
      %p65 = scmp.ne.s32.totalorder %s54, %s55
      %p66 = scmp.eq.s32.totalorder %s25, 0
      %p67 = por %p65, %p66
      %p68 = scmp.ne.s32.totalorder %s54, %s55
      %p69 = scmp.eq.s32.totalorder %s26, 1
      %p70 = por %p68, %p69
      %p72 = scmp.ne.s32.totalorder %s55, %s71
      %p73 = scmp.eq.s32.totalorder %s26, 0
      %p74 = por %p72, %p73
      %s75 = ssub.s32 %s20, %s27
      %p76 = scmp.eq.s32.totalorder %s75, 0
      %s78 = sadd.s32 %s77, 1
      %s79 = scalar_select %p76, %s77, %s78
      %p82 = pneg %p76
      %p83 = scmp.eq.s32.totalorder %s20, 1
      %p84 = por %p82, %p83
      %p85 = scmp.ne.s32.totalorder %s77, %s80
      %p86 = scmp.eq.s32.totalorder %s20, 0
      %p87 = por %p85, %p86
      %p88 = scmp.ne.s32.totalorder %s77, %s80
      %p89 = scmp.eq.s32.totalorder %s25, 1
      %p90 = por %p88, %p89
      %p91 = scmp.ne.s32.totalorder %s80, %s81
      %p92 = scmp.eq.s32.totalorder %s25, 0
      %p93 = por %p91, %p92
      %p94 = scmp.ne.s32.totalorder %s80, %s81
      %p95 = scmp.eq.s32.totalorder %s26, 1
      %p96 = por %p94, %p95
      %p98 = scmp.ne.s32.totalorder %s81, %s97
      %p99 = scmp.eq.s32.totalorder %s26, 0
      %p100 = por %p98, %p99
      %s101 = ssub.s32 %s20, %s27
      %p102 = scmp.eq.s32.totalorder %s101, 0
      %s104 = sadd.s32 %s103, 1
      %s105 = scalar_select %p102, %s103, %s104
      %p108 = pneg %p102
      %p109 = scmp.eq.s32.totalorder %s20, 1
      %p110 = por %p108, %p109
      %p111 = scmp.ne.s32.totalorder %s103, %s106
      %p112 = scmp.eq.s32.totalorder %s20, 0
      %p113 = por %p111, %p112
      %p114 = scmp.ne.s32.totalorder %s103, %s106
      %p115 = scmp.eq.s32.totalorder %s25, 1
      %p116 = por %p114, %p115
      %p117 = scmp.ne.s32.totalorder %s106, %s107
      %p118 = scmp.eq.s32.totalorder %s25, 0
      %p119 = por %p117, %p118
      %p120 = scmp.ne.s32.totalorder %s106, %s107
      %p121 = scmp.eq.s32.totalorder %s26, 1
      %p122 = por %p120, %p121
      %p124 = scmp.ne.s32.totalorder %s107, %s123
      %p125 = scmp.eq.s32.totalorder %s26, 0
      %p126 = por %p124, %p125
      %s127 = ssub.s32 %s20, %s27
      %p128 = scmp.eq.s32.totalorder %s127, 0
      %s130 = sadd.s32 %s129, 1
      %s131 = scalar_select %p128, %s129, %s130
      %p134 = pneg %p128
      %p135 = scmp.eq.s32.totalorder %s20, 1
      %p136 = por %p134, %p135
      %p137 = scmp.ne.s32.totalorder %s129, %s132
      %p138 = scmp.eq.s32.totalorder %s20, 0
      %p139 = por %p137, %p138
      %p140 = scmp.ne.s32.totalorder %s129, %s132
      %p141 = scmp.eq.s32.totalorder %s25, 1
      %p142 = por %p140, %p141
      %p143 = scmp.ne.s32.totalorder %s132, %s133
      %p144 = scmp.eq.s32.totalorder %s25, 0
      %p145 = por %p143, %p144
      %p146 = scmp.ne.s32.totalorder %s132, %s133
      %p147 = scmp.eq.s32.totalorder %s26, 1
      %p148 = por %p146, %p147
      %p150 = scmp.ne.s32.totalorder %s133, %s149
      %p151 = scmp.eq.s32.totalorder %s26, 0
      %p152 = por %p150, %p151
      %p153 = scmp.le.s32.totalorder 1, %s20
      %p154 = scmp.lt.s32.totalorder %s20, 3
      %p155 = pnand %p153, %p154
      %p156 = pneg %p155
      // Predicated region
      $region9: #{tpu_custom_call.1} parent=5 // pred_check
        _
      $region10: #{tpu_custom_call.1} parent=5 // pred_check_branch
        %158 = sbr.rel (%p155) target = $region12
      $region11: #{tpu_custom_call.1} parent=5 // pred_region
        %s159 = ssub.s32 %s20, 1
        // Predicated region
        $region13: #{tpu_custom_call.1} parent=11 // pred_check
          %p160 = pneg %p41
        $region14: #{tpu_custom_call.1} parent=11 // pred_check_branch
          %162 = sbr.rel (%p160) target = $region16
        $region15: #{tpu_custom_call.1} parent=11 // pred_region
          %164 = vsyncadd [#allocation4], 0
          %s165 = sshll.u32 %s0, 4
          %s166 = int_to_ptr.hbm [resolvable:$true] %s165
          %s167 = sshll.u32 [#allocation3], 4
          %s168 = int_to_ptr.vmem [resolvable:$true] %s167
          %173 = dma.hbm_to_vmem [thread:$0]  %s166, 256, %s168, [#allocation4], 128, 128, 8
        $region16: #{tpu_custom_call.1} parent=11 // pred_fallthru
          _
      $region12: #{tpu_custom_call.1} parent=5 // pred_fallthru
        _
      %p174 = scmp.lt.s32.totalorder %s20, 2
      // Predicated region
      $region17: #{tpu_custom_call.1} parent=5 // pred_check
        %p175 = pneg %p174
      $region18: #{tpu_custom_call.1} parent=5 // pred_check_branch
        %177 = sbr.rel (%p175) target = $region20
      $region19: #{tpu_custom_call.1} parent=5 // pred_region
        // Predicated region
        $region21: #{tpu_custom_call.1} parent=19 // pred_check
          %p178 = pneg %p61
        $region22: #{tpu_custom_call.1} parent=19 // pred_check_branch
          %180 = sbr.rel (%p178) target = $region24
        $region23: #{tpu_custom_call.1} parent=19 // pred_region
          %s181 = sand.u32 %s20, 1
          %s182 = scalar_lea.sflag [#allocation7], %s181
          %s183 = sand.u32 %s51, 1
          %s184 = smul.addr %s183, 48
          %s185 = scalar_lea.vmem [#allocation6], %s184
          %187 = vsyncadd %s182, 0
          %s188 = smul.addr %s20, 6
          %s189 = smul.addr %s188, 8
          %s190 = scalar_lea.hbm %s1, %s189
          %s191 = sshll.u32 %s190, 4
          %s192 = int_to_ptr.hbm [resolvable:$true] %s191
          %s193 = sshll.u32 %s185, 4
          %s194 = int_to_ptr.vmem [resolvable:$true] %s193
          %199 = dma.hbm_to_vmem [thread:$0]  %s192, 768, %s194, %s182, 128, 128, 8
        $region24: #{tpu_custom_call.1} parent=19 // pred_fallthru
          _
        // Predicated region
        $region25: #{tpu_custom_call.1} parent=19 // pred_check
          %p200 = pneg %p87
        $region26: #{tpu_custom_call.1} parent=19 // pred_check_branch
          %202 = sbr.rel (%p200) target = $region28
        $region27: #{tpu_custom_call.1} parent=19 // pred_region
          %s203 = sand.u32 %s20, 1
          %s204 = scalar_lea.sflag [#allocation7], %s203
          %s205 = sand.u32 %s77, 1
          %s206 = smul.addr %s205, 48
          %s207 = scalar_lea.vmem [#allocation8], %s206
          %209 = vsyncadd %s204, 0
          %s210 = smul.addr %s20, 6
          %s211 = smul.addr %s210, 8
          %s212 = scalar_lea.hbm %s2, %s211
          %s213 = sshll.u32 %s212, 4
          %s214 = int_to_ptr.hbm [resolvable:$true] %s213
          %s215 = sshll.u32 %s207, 4
          %s216 = int_to_ptr.vmem [resolvable:$true] %s215
          %221 = dma.hbm_to_vmem [thread:$0]  %s214, 768, %s216, %s204, 128, 128, 8
        $region28: #{tpu_custom_call.1} parent=19 // pred_fallthru
          _
        // Predicated region
        $region29: #{tpu_custom_call.1} parent=19 // pred_check
          %p222 = pneg %p113
        $region30: #{tpu_custom_call.1} parent=19 // pred_check_branch
          %224 = sbr.rel (%p222) target = $region32
        $region31: #{tpu_custom_call.1} parent=19 // pred_region
          %s225 = sand.u32 %s103, 1
          %s226 = scalar_lea.sflag [#allocation10], %s225
          %s227 = sand.u32 %s103, 1
          %s228 = smul.addr %s227, 16
          %s229 = scalar_lea.vmem [#allocation9], %s228
          %231 = vsyncadd %s226, 0
          %s232 = smul.addr %s20, 2
          %s233 = smul.addr %s232, 8
          %s234 = scalar_lea.hbm %s3, %s233
          %s235 = sshll.u32 %s234, 4
          %s236 = int_to_ptr.hbm [resolvable:$true] %s235
          %s237 = sshll.u32 %s229, 4
          %s238 = int_to_ptr.vmem [resolvable:$true] %s237
          %243 = dma.hbm_to_vmem [thread:$0]  %s236, 256, %s238, %s226, 128, 128, 8
        $region32: #{tpu_custom_call.1} parent=19 // pred_fallthru
          _
      $region20: #{tpu_custom_call.1} parent=5 // pred_fallthru
        _
      %p244 = scmp.le.s32.totalorder 1, %s20
      %p245 = scmp.lt.s32.totalorder %s20, 3
      %p246 = pnand %p244, %p245
      %p247 = pneg %p246
      // Predicated region
      $region33: #{tpu_custom_call.1} parent=5 // pred_check
        _
      $region34: #{tpu_custom_call.1} parent=5 // pred_check_branch
        %249 = sbr.rel (%p246) target = $region36
      $region35: #{tpu_custom_call.1} parent=5 // pred_region
        %s250 = ssub.s32 %s20, 1
        // Predicated region
        $region37: #{tpu_custom_call.1} parent=35 // pred_check
          %p251 = pneg %p41
        $region38: #{tpu_custom_call.1} parent=35 // pred_check_branch
          %253 = sbr.rel (%p251) target = $region40
        $region39: #{tpu_custom_call.1} parent=35 // pred_region
          %255 = dma.done [#allocation4], 256
        $region40: #{tpu_custom_call.1} parent=35 // pred_fallthru
          _
        %s256 = sand.u32 %s25, 1
        %s257 = scalar_lea.sflag [#allocation7], %s256
        %s258 = sand.u32 %s54, 1
        %s259 = smul.addr %s258, 48
        %s260 = scalar_lea.vmem [#allocation6], %s259
        // Predicated region
        $region41: #{tpu_custom_call.1} parent=35 // pred_check
          %p261 = pneg %p67
        $region42: #{tpu_custom_call.1} parent=35 // pred_check_branch
          %263 = sbr.rel (%p261) target = $region44
        $region43: #{tpu_custom_call.1} parent=35 // pred_region
          %265 = dma.done %s257, 768
        $region44: #{tpu_custom_call.1} parent=35 // pred_fallthru
          _
        %s266 = sand.u32 %s25, 1
        %s267 = scalar_lea.sflag [#allocation7], %s266
        %s268 = sand.u32 %s80, 1
        %s269 = smul.addr %s268, 48
        %s270 = scalar_lea.vmem [#allocation8], %s269
        // Predicated region
        $region45: #{tpu_custom_call.1} parent=35 // pred_check
          %p271 = pneg %p93
        $region46: #{tpu_custom_call.1} parent=35 // pred_check_branch
          %273 = sbr.rel (%p271) target = $region48
        $region47: #{tpu_custom_call.1} parent=35 // pred_region
          %275 = dma.done %s267, 768
        $region48: #{tpu_custom_call.1} parent=35 // pred_fallthru
          _
        %s276 = sand.u32 %s106, 1
        %s277 = scalar_lea.sflag [#allocation10], %s276
        %s278 = sand.u32 %s106, 1
        %s279 = smul.addr %s278, 16
        %s280 = scalar_lea.vmem [#allocation9], %s279
        // Predicated region
        $region49: #{tpu_custom_call.1} parent=35 // pred_check
          %p281 = pneg %p119
        $region50: #{tpu_custom_call.1} parent=35 // pred_check_branch
          %283 = sbr.rel (%p281) target = $region52
        $region51: #{tpu_custom_call.1} parent=35 // pred_region
          %285 = dma.done %s277, 256
        $region52: #{tpu_custom_call.1} parent=35 // pred_fallthru
          _
        %p286 = pneg %p41
        %p287 = pneg %p38
        %s288 = sand.u32 %s25, 1
        %s289 = scalar_lea.sflag [#allocation7], %s288
        %s290 = sand.u32 %s54, 1
        %s291 = smul.addr %s290, 48
        %s292 = scalar_lea.vmem [#allocation6], %s291
        %p293 = pneg %p67
        %p294 = pneg %p64
        %s295 = sand.u32 %s25, 1
        %s296 = scalar_lea.sflag [#allocation7], %s295
        %s297 = sand.u32 %s80, 1
        %s298 = smul.addr %s297, 48
        %s299 = scalar_lea.vmem [#allocation8], %s298
        %p300 = pneg %p93
        %p301 = pneg %p90
        %s302 = sand.u32 %s106, 1
        %s303 = scalar_lea.sflag [#allocation10], %s302
        %s304 = sand.u32 %s106, 1
        %s305 = smul.addr %s304, 16
        %s306 = scalar_lea.vmem [#allocation9], %s305
        %p307 = pneg %p119
        %p308 = pneg %p116
        %p309 = pneg %p145
        %p310 = pneg %p142
        %s311 = sand.u32 %s132, 1
        %s312 = scalar_lea.sflag [#allocation5], %s311
        %s313 = sand.u32 %s132, 1
        %s314 = scalar_lea.vmem [#allocation11], %s313
        %v315 = vld [vmem:[%s260] sm:$0xff]
        %v316 = vld [vmem:[%s260 + $0x8] sm:$0xff]
        %v317 = vld [vmem:[%s260 + $0x10] sm:$0xff]
        %v318 = vld [vmem:[%s260 + $0x18] sm:$0xff]
        %v319 = vld [vmem:[%s260 + $0x20] sm:$0xff]
        %v320 = vld [vmem:[%s260 + $0x28] sm:$0xff]
        %v321 = vld [vmem:[%s270] sm:$0xff]
        %v322 = vld [vmem:[%s270 + $0x8] sm:$0xff]
        %v323 = vld [vmem:[%s270 + $0x10] sm:$0xff]
        %v324 = vld [vmem:[%s270 + $0x18] sm:$0xff]
        %v325 = vld [vmem:[%s270 + $0x20] sm:$0xff]
        %v326 = vld [vmem:[%s270 + $0x28] sm:$0xff]
        %v327 = vld [vmem:[%s280] sm:$0xff]
        %v328 = vld [vmem:[%s280 + $0x8] sm:$0xff]
        %v329 = vld [vmem:[#allocation3] sm:$0xff]
        %v330 = vld [vmem:[#allocation3 + $0x8] sm:$0xff]
        %v331 = vmax.f32 %v321, 0.0
        %v332 = vmax.f32 %v322, 0.0
        %v333 = vmax.f32 %v323, 0.0
        %v334 = vmax.f32 %v324, 0.0
        %v335 = vmax.f32 %v325, 0.0
        %v336 = vmax.f32 %v326, 0.0
        %v337 = vmin.f32 %v331, 1.0
        %v338 = vmin.f32 %v332, 1.0
        %v339 = vmin.f32 %v333, 1.0
        %v340 = vmin.f32 %v334, 1.0
        %v341 = vmin.f32 %v335, 1.0
        %v342 = vmin.f32 %v336, 1.0
        %v343 = vmax.f32 %v315, 0.0
        %v344 = vmax.f32 %v316, 0.0
        %v345 = vmax.f32 %v317, 0.0
        %v346 = vmax.f32 %v318, 0.0
        %v347 = vmax.f32 %v319, 0.0
        %v348 = vmax.f32 %v320, 0.0
        %v349 = vmin.f32 %v343, 1.0
        %v350 = vmin.f32 %v344, 1.0
        %v351 = vmin.f32 %v345, 1.0
        %v352 = vmin.f32 %v346, 1.0
        %v353 = vmin.f32 %v347, 1.0
        %v354 = vmin.f32 %v348, 1.0
        %v355 = vsub.f32 %v337, %v349
        %v356 = vsub.f32 %v338, %v350
        %v357 = vsub.f32 %v339, %v351
        %v358 = vsub.f32 %v340, %v352
        %v359 = vsub.f32 %v341, %v353
        %v360 = vsub.f32 %v342, %v354
        %v361 = vmul.f32 %v355, %v355
        %v362 = vmul.f32 %v356, %v356
        %v363 = vmul.f32 %v357, %v357
        %v364 = vmul.f32 %v358, %v358
        %v365 = vmul.f32 %v359, %v359
        %v366 = vmul.f32 %v360, %v360
        %vm367 = vcmask 130048
        %v368 = vsel %vm367, %v327, 0.0
        %v369 = vsel %vm367, %v328, 0.0
        %v370 = vadd.f32 %v368, %v369
        %371 = vadd.xlane.f32.xlu0 %v370
        %v372 = vpop.xlane.xlu0 %371
        %v373 = vrot.slane %v372, 4
        %v374 = vadd.f32 %v372, %v373
        %v375 = vrot.slane %v374, 2
        %v376 = vadd.f32 %v374, %v375
        %v377 = vrot.slane %v376, 1
        %v378 = vadd.f32 %v376, %v377
        %s379 = vtos %v378
        %s380 = smul.f32 %s379, 3.0
        %v381 = vstv %s380
        %v382 = vrcp.pop %v381
        %v383 = vmul.f32 %v381, %v382
        %v384 = vsub.f32 1.0, %v383
        %v385 = vmul.f32 %v382, %v384
        %v386 = vadd.f32 %v382, %v385
        %vm387 = vweird.f32 %v381
        %vm388 = vweird.f32 %v382
        %vm389 = vmor %vm387, %vm388
        %v390 = vsel %vm389, %v382, %v386
        %v391 = vand.u32 2147483647, %v381
        %vm392 = vcmp.eq.f32.partialorder %v391, 8.507059e+37
        %v393 = vand.u32 %v381, 2147483648
        %v394 = vor.u32 1.1754944e-38, %v393
        %v395 = vsel %vm392, %v394, %v390
        %s396 = vtos %v395
        %v397 = vsel %vm367, %v361, 0.0
        %v398 = vsel %vm367, %v362, 0.0
        %v399 = vadd.f32 %v397, %v398
        %v400 = vsel %vm367, %v363, 0.0
        %v401 = vadd.f32 %v399, %v400
        %v402 = vsel %vm367, %v364, 0.0
        %v403 = vadd.f32 %v401, %v402
        %v404 = vsel %vm367, %v365, 0.0
        %v405 = vadd.f32 %v403, %v404
        %v406 = vsel %vm367, %v366, 0.0
        %v407 = vadd.f32 %v405, %v406
        %408 = vadd.xlane.f32.xlu0 %v407
        %v409 = vpop.xlane.xlu0 %408
        %v410 = vrot.slane %v409, 4
        %v411 = vadd.f32 %v409, %v410
        %v412 = vrot.slane %v411, 2
        %v413 = vadd.f32 %v411, %v412
        %v414 = vrot.slane %v413, 1
        %v415 = vadd.f32 %v413, %v414
        %s416 = vtos %v415
        %s417 = smul.f32 %s416, 0.0013020834
        %v418 = vmul.f32 %v361, %v327
        %v419 = vmul.f32 %v362, %v328
        %v420 = vmul.f32 %v363, %v327
        %v421 = vmul.f32 %v364, %v328
        %v422 = vmul.f32 %v365, %v327
        %v423 = vmul.f32 %v366, %v328
        %v424 = vsel %vm367, %v418, 0.0
        %v425 = vsel %vm367, %v419, 0.0
        %v426 = vadd.f32 %v424, %v425
        %v427 = vsel %vm367, %v420, 0.0
        %v428 = vadd.f32 %v426, %v427
        %v429 = vsel %vm367, %v421, 0.0
        %v430 = vadd.f32 %v428, %v429
        %v431 = vsel %vm367, %v422, 0.0
        %v432 = vadd.f32 %v430, %v431
        %v433 = vsel %vm367, %v423, 0.0
        %v434 = vadd.f32 %v432, %v433
        %435 = vadd.xlane.f32.xlu0 %v434
        %v436 = vpop.xlane.xlu0 %435
        %v437 = vrot.slane %v436, 4
        %v438 = vadd.f32 %v436, %v437
        %v439 = vrot.slane %v438, 2
        %v440 = vadd.f32 %v438, %v439
        %v441 = vrot.slane %v440, 1
        %v442 = vadd.f32 %v440, %v441
        %s443 = vtos %v442
        %s444 = smul.f32 %s443, %s396
        %v445 = vstv %s417
        %v446 = vlog2.pop %v445
        %v447 = vmul.f32 %v446, 0.6931472
        %s448 = vtos %v447
        %s449 = smul.f32 %s448, -4.3429446
        %v450 = vstv %s444
        %v451 = vlog2.pop %v450
        %v452 = vmul.f32 %v451, 0.6931472
        %s453 = vtos %v452
        %s454 = smul.f32 %s453, -4.3429446
        %455 = vst.msk [vmem:[#allocation2] sm:$0xff] %vm367, %v315
        %456 = vst.msk [vmem:[#allocation2 + $0x8] sm:$0xff] %vm367, %v316
        %457 = vst.msk [vmem:[#allocation2 + $0x10] sm:$0xff] %vm367, %v317
        %458 = vst.msk [vmem:[#allocation2 + $0x18] sm:$0xff] %vm367, %v318
        %459 = vst.msk [vmem:[#allocation2 + $0x20] sm:$0xff] %vm367, %v319
        %460 = vst.msk [vmem:[#allocation2 + $0x28] sm:$0xff] %vm367, %v320
        %461 = vst.msk [vmem:[#allocation2 + $0x30] sm:$0xff] %vm367, %v321
        %462 = vst.msk [vmem:[#allocation2 + $0x38] sm:$0xff] %vm367, %v322
        %463 = vst.msk [vmem:[#allocation2 + $0x40] sm:$0xff] %vm367, %v323
        %464 = vst.msk [vmem:[#allocation2 + $0x48] sm:$0xff] %vm367, %v324
        %465 = vst.msk [vmem:[#allocation2 + $0x50] sm:$0xff] %vm367, %v325
        %466 = vst.msk [vmem:[#allocation2 + $0x58] sm:$0xff] %vm367, %v326
        %v467 = vmul.f32 %v315, %v315
        %v468 = vmul.f32 %v316, %v316
        %v469 = vmul.f32 %v317, %v317
        %v470 = vmul.f32 %v318, %v318
        %v471 = vmul.f32 %v319, %v319
        %v472 = vmul.f32 %v320, %v320
        %473 = vst.msk [vmem:[#allocation2 + $0x60] sm:$0xff] %vm367, %v467
        %474 = vst.msk [vmem:[#allocation2 + $0x68] sm:$0xff] %vm367, %v468
        %475 = vst.msk [vmem:[#allocation2 + $0x70] sm:$0xff] %vm367, %v469
        %476 = vst.msk [vmem:[#allocation2 + $0x78] sm:$0xff] %vm367, %v470
        %477 = vst.msk [vmem:[#allocation2 + $0x80] sm:$0xff] %vm367, %v471
        %478 = vst.msk [vmem:[#allocation2 + $0x88] sm:$0xff] %vm367, %v472
        %v479 = vmul.f32 %v321, %v321
        %v480 = vmul.f32 %v322, %v322
        %v481 = vmul.f32 %v323, %v323
        %v482 = vmul.f32 %v324, %v324
        %v483 = vmul.f32 %v325, %v325
        %v484 = vmul.f32 %v326, %v326
        %485 = vst.msk [vmem:[#allocation2 + $0x90] sm:$0xff] %vm367, %v479
        %486 = vst.msk [vmem:[#allocation2 + $0x98] sm:$0xff] %vm367, %v480
        %487 = vst.msk [vmem:[#allocation2 + $0xa0] sm:$0xff] %vm367, %v481
        %488 = vst.msk [vmem:[#allocation2 + $0xa8] sm:$0xff] %vm367, %v482
        %489 = vst.msk [vmem:[#allocation2 + $0xb0] sm:$0xff] %vm367, %v483
        %490 = vst.msk [vmem:[#allocation2 + $0xb8] sm:$0xff] %vm367, %v484
        %v491 = vmul.f32 %v315, %v321
        %v492 = vmul.f32 %v316, %v322
        %v493 = vmul.f32 %v317, %v323
        %v494 = vmul.f32 %v318, %v324
        %v495 = vmul.f32 %v319, %v325
        %v496 = vmul.f32 %v320, %v326
        %497 = vst.msk [vmem:[#allocation2 + $0xc0] sm:$0xff] %vm367, %v491
        %498 = vst.msk [vmem:[#allocation2 + $0xc8] sm:$0xff] %vm367, %v492
        %499 = vst.msk [vmem:[#allocation2 + $0xd0] sm:$0xff] %vm367, %v493
        %500 = vst.msk [vmem:[#allocation2 + $0xd8] sm:$0xff] %vm367, %v494
        %501 = vst.msk [vmem:[#allocation2 + $0xe0] sm:$0xff] %vm367, %v495
        %502 = vst.msk [vmem:[#allocation2 + $0xe8] sm:$0xff] %vm367, %v496
        %v503 = vld [vmem:[#allocation2] sm:$0xff]
        %v504 = vld [vmem:[#allocation2 + $0x8] sm:$0xff]
        %v505 = vld [vmem:[#allocation2 + $0x10] sm:$0xff]
        %v506 = vld [vmem:[#allocation2 + $0x18] sm:$0xff]
        %v507 = vld [vmem:[#allocation2 + $0x20] sm:$0xff]
        %v508 = vld [vmem:[#allocation2 + $0x28] sm:$0xff]
        %v509 = vld [vmem:[#allocation2 + $0x30] sm:$0xff]
        %v510 = vld [vmem:[#allocation2 + $0x38] sm:$0xff]
        %v511 = vld [vmem:[#allocation2 + $0x40] sm:$0xff]
        %v512 = vld [vmem:[#allocation2 + $0x48] sm:$0xff]
        %v513 = vld [vmem:[#allocation2 + $0x50] sm:$0xff]
        %v514 = vld [vmem:[#allocation2 + $0x58] sm:$0xff]
        %v515 = vld [vmem:[#allocation2 + $0x60] sm:$0xff]
        %v516 = vld [vmem:[#allocation2 + $0x68] sm:$0xff]
        %v517 = vld [vmem:[#allocation2 + $0x70] sm:$0xff]
        %v518 = vld [vmem:[#allocation2 + $0x78] sm:$0xff]
        %v519 = vld [vmem:[#allocation2 + $0x80] sm:$0xff]
        %v520 = vld [vmem:[#allocation2 + $0x88] sm:$0xff]
        %v521 = vld [vmem:[#allocation2 + $0x90] sm:$0xff]
        %v522 = vld [vmem:[#allocation2 + $0x98] sm:$0xff]
        %v523 = vld [vmem:[#allocation2 + $0xa0] sm:$0xff]
        %v524 = vld [vmem:[#allocation2 + $0xa8] sm:$0xff]
        %v525 = vld [vmem:[#allocation2 + $0xb0] sm:$0xff]
        %v526 = vld [vmem:[#allocation2 + $0xb8] sm:$0xff]
        %v527 = vld [vmem:[#allocation2 + $0xc0] sm:$0xff]
        %v528 = vld [vmem:[#allocation2 + $0xc8] sm:$0xff]
        %v529 = vld [vmem:[#allocation2 + $0xd0] sm:$0xff]
        %v530 = vld [vmem:[#allocation2 + $0xd8] sm:$0xff]
        %v531 = vld [vmem:[#allocation2 + $0xe0] sm:$0xff]
        %v532 = vld [vmem:[#allocation2 + $0xe8] sm:$0xff]
        %v534 = vsel %vm367, %v503, 0
        %v537 = vsel %vm367, %v504, 0
        %v540 = vsel %vm367, %v505, 0
        %v543 = vsel %vm367, %v506, 0
        %v546 = vsel %vm367, %v507, 0
        %v549 = vsel %vm367, %v508, 0
        %v552 = vsel %vm367, %v509, 0
        %v555 = vsel %vm367, %v510, 0
        %v558 = vsel %vm367, %v511, 0
        %v561 = vsel %vm367, %v512, 0
        %v564 = vsel %vm367, %v513, 0
        %v567 = vsel %vm367, %v514, 0
        %v570 = vsel %vm367, %v515, 0
        %v573 = vsel %vm367, %v516, 0
        %v576 = vsel %vm367, %v517, 0
        %v579 = vsel %vm367, %v518, 0
        %v582 = vsel %vm367, %v519, 0
        %v585 = vsel %vm367, %v520, 0
        %v588 = vsel %vm367, %v521, 0
        %v591 = vsel %vm367, %v522, 0
        %v594 = vsel %vm367, %v523, 0
        %v597 = vsel %vm367, %v524, 0
        %v600 = vsel %vm367, %v525, 0
        %v603 = vsel %vm367, %v526, 0
        %v606 = vsel %vm367, %v527, 0
        %v609 = vsel %vm367, %v528, 0
        %v612 = vsel %vm367, %v529, 0
        %v615 = vsel %vm367, %v530, 0
        %v618 = vsel %vm367, %v531, 0
        %v621 = vsel %vm367, %v532, 0
        %623 = vmatpush.msra.mxu0 0.0
        %624 = vmatpush.msra.mxu0 0.0
        %625 = vmatpush.msra.mxu0 0.0
        %626 = vmatpush.msra.mxu0 0.0
        %627 = vmatpush.msra.mxu0 0.0
        %628 = vmatpush.msra.mxu0 0.0
        %629 = vmatpush.msra.mxu0 0.0
        %630 = vmatpush.msra.mxu0 0.0
        %631 = vmatpush.msra.mxu0 0.0
        %632 = vmatpush.msra.mxu0 0.0
        %633 = vmatpush.msra.mxu0 0.0
        %634 = vmatpush.msra.mxu0 0.0
        %635 = vmatpush.msra.mxu0 0.0
        %636 = vmatpush.msra.mxu0 0.0
        %637 = vmatpush.msra.mxu0 %v330
        %638 = vmatpush.msra.mxu0 %v329
        %639 = vmatmul.f32.gmra.mxu0 %v534
        %v640 = vpop.f32.mrf.mxu0
        %v641 = vadd.f32 0.0, %v640
        %642 = vmatmul.f32.gmra.mxu0 %v537
        %v643 = vpop.f32.mrf.mxu0
        %v644 = vadd.f32 0.0, %v643
        %645 = vmatmul.f32.gmra.mxu0 %v540
        %v646 = vpop.f32.mrf.mxu0
        %v647 = vadd.f32 0.0, %v646
        %648 = vmatmul.f32.gmra.mxu0 %v543
        %v649 = vpop.f32.mrf.mxu0
        %v650 = vadd.f32 0.0, %v649
        %651 = vmatmul.f32.gmra.mxu0 %v546
        %v652 = vpop.f32.mrf.mxu0
        %v653 = vadd.f32 0.0, %v652
        %654 = vmatmul.f32.gmra.mxu0 %v549
        %v655 = vpop.f32.mrf.mxu0
        %v656 = vadd.f32 0.0, %v655
        %657 = vmatmul.f32.gmra.mxu0 %v552
        %v658 = vpop.f32.mrf.mxu0
        %v659 = vadd.f32 0.0, %v658
        %660 = vmatmul.f32.gmra.mxu0 %v555
        %v661 = vpop.f32.mrf.mxu0
        %v662 = vadd.f32 0.0, %v661
        %663 = vmatmul.f32.gmra.mxu0 %v558
        %v664 = vpop.f32.mrf.mxu0
        %v665 = vadd.f32 0.0, %v664
        %666 = vmatmul.f32.gmra.mxu0 %v561
        %v667 = vpop.f32.mrf.mxu0
        %v668 = vadd.f32 0.0, %v667
        %669 = vmatmul.f32.gmra.mxu0 %v564
        %v670 = vpop.f32.mrf.mxu0
        %v671 = vadd.f32 0.0, %v670
        %672 = vmatmul.f32.gmra.mxu0 %v567
        %v673 = vpop.f32.mrf.mxu0
        %v674 = vadd.f32 0.0, %v673
        %675 = vmatmul.f32.gmra.mxu0 %v570
        %v676 = vpop.f32.mrf.mxu0
        %v677 = vadd.f32 0.0, %v676
        %678 = vmatmul.f32.gmra.mxu0 %v573
        %v679 = vpop.f32.mrf.mxu0
        %v680 = vadd.f32 0.0, %v679
        %681 = vmatmul.f32.gmra.mxu0 %v576
        %v682 = vpop.f32.mrf.mxu0
        %v683 = vadd.f32 0.0, %v682
        %684 = vmatmul.f32.gmra.mxu0 %v579
        %v685 = vpop.f32.mrf.mxu0
        %v686 = vadd.f32 0.0, %v685
        %687 = vmatmul.f32.gmra.mxu0 %v582
        %v688 = vpop.f32.mrf.mxu0
        %v689 = vadd.f32 0.0, %v688
        %690 = vmatmul.f32.gmra.mxu0 %v585
        %v691 = vpop.f32.mrf.mxu0
        %v692 = vadd.f32 0.0, %v691
        %693 = vmatmul.f32.gmra.mxu0 %v588
        %v694 = vpop.f32.mrf.mxu0
        %v695 = vadd.f32 0.0, %v694
        %696 = vmatmul.f32.gmra.mxu0 %v591
        %v697 = vpop.f32.mrf.mxu0
        %v698 = vadd.f32 0.0, %v697
        %699 = vmatmul.f32.gmra.mxu0 %v594
        %v700 = vpop.f32.mrf.mxu0
        %v701 = vadd.f32 0.0, %v700
        %702 = vmatmul.f32.gmra.mxu0 %v597
        %v703 = vpop.f32.mrf.mxu0
        %v704 = vadd.f32 0.0, %v703
        %705 = vmatmul.f32.gmra.mxu0 %v600
        %v706 = vpop.f32.mrf.mxu0
        %v707 = vadd.f32 0.0, %v706
        %708 = vmatmul.f32.gmra.mxu0 %v603
        %v709 = vpop.f32.mrf.mxu0
        %v710 = vadd.f32 0.0, %v709
        %711 = vmatmul.f32.gmra.mxu0 %v606
        %v712 = vpop.f32.mrf.mxu0
        %v713 = vadd.f32 0.0, %v712
        %714 = vmatmul.f32.gmra.mxu0 %v609
        %v715 = vpop.f32.mrf.mxu0
        %v716 = vadd.f32 0.0, %v715
        %717 = vmatmul.f32.gmra.mxu0 %v612
        %v718 = vpop.f32.mrf.mxu0
        %v719 = vadd.f32 0.0, %v718
        %720 = vmatmul.f32.gmra.mxu0 %v615
        %v721 = vpop.f32.mrf.mxu0
        %v722 = vadd.f32 0.0, %v721
        %723 = vmatmul.f32.gmra.mxu0 %v618
        %v724 = vpop.f32.mrf.mxu0
        %v725 = vadd.f32 0.0, %v724
        %726 = vmatmul.f32.gmra.mxu0 %v621
        %v727 = vpop.f32.mrf.mxu0
        %v728 = vadd.f32 0.0, %v727
        %729 = vdwg.mxu0
        %730 = vxpose.xlu0.b32.start [1/16] %v641, 128
        %731 = vxpose.xlu0.b32.cont [2/16] %v644, 128
        %732 = vxpose.xlu0.b32.cont [3/16] 0.0, 128
        %733 = vxpose.xlu0.b32.cont [4/16] 0.0, 128
        %734 = vxpose.xlu0.b32.cont [5/16] 0.0, 128
        %735 = vxpose.xlu0.b32.cont [6/16] 0.0, 128
        %736 = vxpose.xlu0.b32.cont [7/16] 0.0, 128
        %737 = vxpose.xlu0.b32.cont [8/16] 0.0, 128
        %738 = vxpose.xlu0.b32.cont [9/16] 0.0, 128
        %739 = vxpose.xlu0.b32.cont [10/16] 0.0, 128
        %740 = vxpose.xlu0.b32.cont [11/16] 0.0, 128
        %741 = vxpose.xlu0.b32.cont [12/16] 0.0, 128
        %742 = vxpose.xlu0.b32.cont [13/16] 0.0, 128
        %743 = vxpose.xlu0.b32.cont [14/16] 0.0, 128
        %744 = vxpose.xlu0.b32.cont [15/16] 0.0, 128
        %745 = vxpose.xlu0.b32.end [16/16] 0.0, 128
        %v746 = vpop.trf.xlu0
        %v747 = vpop.trf.xlu0
        %v748 = vpop.trf.xlu0
        %v749 = vpop.trf.xlu0
        %v750 = vpop.trf.xlu0
        %v751 = vpop.trf.xlu0
        %v752 = vpop.trf.xlu0
        %v753 = vpop.trf.xlu0
        %v754 = vpop.trf.xlu0
        %v755 = vpop.trf.xlu0
        %v756 = vpop.trf.xlu0
        %v757 = vpop.trf.xlu0
        %v758 = vpop.trf.xlu0
        %v759 = vpop.trf.xlu0
        %v760 = vpop.trf.xlu0
        %v761 = vpop.trf.xlu0
        %762 = vxpose.xlu0.b32.start [1/16] %v647, 128
        %763 = vxpose.xlu0.b32.cont [2/16] %v650, 128
        %764 = vxpose.xlu0.b32.cont [3/16] 0.0, 128
        %765 = vxpose.xlu0.b32.cont [4/16] 0.0, 128
        %766 = vxpose.xlu0.b32.cont [5/16] 0.0, 128
        %767 = vxpose.xlu0.b32.cont [6/16] 0.0, 128
        %768 = vxpose.xlu0.b32.cont [7/16] 0.0, 128
        %769 = vxpose.xlu0.b32.cont [8/16] 0.0, 128
        %770 = vxpose.xlu0.b32.cont [9/16] 0.0, 128
        %771 = vxpose.xlu0.b32.cont [10/16] 0.0, 128
        %772 = vxpose.xlu0.b32.cont [11/16] 0.0, 128
        %773 = vxpose.xlu0.b32.cont [12/16] 0.0, 128
        %774 = vxpose.xlu0.b32.cont [13/16] 0.0, 128
        %775 = vxpose.xlu0.b32.cont [14/16] 0.0, 128
        %776 = vxpose.xlu0.b32.cont [15/16] 0.0, 128
        %777 = vxpose.xlu0.b32.end [16/16] 0.0, 128
        %v778 = vpop.trf.xlu0
        %v779 = vpop.trf.xlu0
        %v780 = vpop.trf.xlu0
        %v781 = vpop.trf.xlu0
        %v782 = vpop.trf.xlu0
        %v783 = vpop.trf.xlu0
        %v784 = vpop.trf.xlu0
        %v785 = vpop.trf.xlu0
        %v786 = vpop.trf.xlu0
        %v787 = vpop.trf.xlu0
        %v788 = vpop.trf.xlu0
        %v789 = vpop.trf.xlu0
        %v790 = vpop.trf.xlu0
        %v791 = vpop.trf.xlu0
        %v792 = vpop.trf.xlu0
        %v793 = vpop.trf.xlu0
        %794 = vxpose.xlu0.b32.start [1/16] %v653, 128
        %795 = vxpose.xlu0.b32.cont [2/16] %v656, 128
        %796 = vxpose.xlu0.b32.cont [3/16] 0.0, 128
        %797 = vxpose.xlu0.b32.cont [4/16] 0.0, 128
        %798 = vxpose.xlu0.b32.cont [5/16] 0.0, 128
        %799 = vxpose.xlu0.b32.cont [6/16] 0.0, 128
        %800 = vxpose.xlu0.b32.cont [7/16] 0.0, 128
        %801 = vxpose.xlu0.b32.cont [8/16] 0.0, 128
        %802 = vxpose.xlu0.b32.cont [9/16] 0.0, 128
        %803 = vxpose.xlu0.b32.cont [10/16] 0.0, 128
        %804 = vxpose.xlu0.b32.cont [11/16] 0.0, 128
        %805 = vxpose.xlu0.b32.cont [12/16] 0.0, 128
        %806 = vxpose.xlu0.b32.cont [13/16] 0.0, 128
        %807 = vxpose.xlu0.b32.cont [14/16] 0.0, 128
        %808 = vxpose.xlu0.b32.cont [15/16] 0.0, 128
        %809 = vxpose.xlu0.b32.end [16/16] 0.0, 128
        %v810 = vpop.trf.xlu0
        %v811 = vpop.trf.xlu0
        %v812 = vpop.trf.xlu0
        %v813 = vpop.trf.xlu0
        %v814 = vpop.trf.xlu0
        %v815 = vpop.trf.xlu0
        %v816 = vpop.trf.xlu0
        %v817 = vpop.trf.xlu0
        %v818 = vpop.trf.xlu0
        %v819 = vpop.trf.xlu0
        %v820 = vpop.trf.xlu0
        %v821 = vpop.trf.xlu0
        %v822 = vpop.trf.xlu0
        %v823 = vpop.trf.xlu0
        %v824 = vpop.trf.xlu0
        %v825 = vpop.trf.xlu0
        %826 = vxpose.xlu0.b32.start [1/16] %v659, 128
        %827 = vxpose.xlu0.b32.cont [2/16] %v662, 128
        %828 = vxpose.xlu0.b32.cont [3/16] 0.0, 128
        %829 = vxpose.xlu0.b32.cont [4/16] 0.0, 128
        %830 = vxpose.xlu0.b32.cont [5/16] 0.0, 128
        %831 = vxpose.xlu0.b32.cont [6/16] 0.0, 128
        %832 = vxpose.xlu0.b32.cont [7/16] 0.0, 128
        %833 = vxpose.xlu0.b32.cont [8/16] 0.0, 128
        %834 = vxpose.xlu0.b32.cont [9/16] 0.0, 128
        %835 = vxpose.xlu0.b32.cont [10/16] 0.0, 128
        %836 = vxpose.xlu0.b32.cont [11/16] 0.0, 128
        %837 = vxpose.xlu0.b32.cont [12/16] 0.0, 128
        %838 = vxpose.xlu0.b32.cont [13/16] 0.0, 128
        %839 = vxpose.xlu0.b32.cont [14/16] 0.0, 128
        %840 = vxpose.xlu0.b32.cont [15/16] 0.0, 128
        %841 = vxpose.xlu0.b32.end [16/16] 0.0, 128
        %v842 = vpop.trf.xlu0
        %v843 = vpop.trf.xlu0
        %v844 = vpop.trf.xlu0
        %v845 = vpop.trf.xlu0
        %v846 = vpop.trf.xlu0
        %v847 = vpop.trf.xlu0
        %v848 = vpop.trf.xlu0
        %v849 = vpop.trf.xlu0
        %v850 = vpop.trf.xlu0
        %v851 = vpop.trf.xlu0
        %v852 = vpop.trf.xlu0
        %v853 = vpop.trf.xlu0
        %v854 = vpop.trf.xlu0
        %v855 = vpop.trf.xlu0
        %v856 = vpop.trf.xlu0
        %v857 = vpop.trf.xlu0
        %858 = vxpose.xlu0.b32.start [1/16] %v665, 128
        %859 = vxpose.xlu0.b32.cont [2/16] %v668, 128
        %860 = vxpose.xlu0.b32.cont [3/16] 0.0, 128
        %861 = vxpose.xlu0.b32.cont [4/16] 0.0, 128
        %862 = vxpose.xlu0.b32.cont [5/16] 0.0, 128
        %863 = vxpose.xlu0.b32.cont [6/16] 0.0, 128
        %864 = vxpose.xlu0.b32.cont [7/16] 0.0, 128
        %865 = vxpose.xlu0.b32.cont [8/16] 0.0, 128
        %866 = vxpose.xlu0.b32.cont [9/16] 0.0, 128
        %867 = vxpose.xlu0.b32.cont [10/16] 0.0, 128
        %868 = vxpose.xlu0.b32.cont [11/16] 0.0, 128
        %869 = vxpose.xlu0.b32.cont [12/16] 0.0, 128
        %870 = vxpose.xlu0.b32.cont [13/16] 0.0, 128
        %871 = vxpose.xlu0.b32.cont [14/16] 0.0, 128
        %872 = vxpose.xlu0.b32.cont [15/16] 0.0, 128
        %873 = vxpose.xlu0.b32.end [16/16] 0.0, 128
        %v874 = vpop.trf.xlu0
        %v875 = vpop.trf.xlu0
        %v876 = vpop.trf.xlu0
        %v877 = vpop.trf.xlu0
        %v878 = vpop.trf.xlu0
        %v879 = vpop.trf.xlu0
        %v880 = vpop.trf.xlu0
        %v881 = vpop.trf.xlu0
        %v882 = vpop.trf.xlu0
        %v883 = vpop.trf.xlu0
        %v884 = vpop.trf.xlu0
        %v885 = vpop.trf.xlu0
        %v886 = vpop.trf.xlu0
        %v887 = vpop.trf.xlu0
        %v888 = vpop.trf.xlu0
        %v889 = vpop.trf.xlu0
        %890 = vxpose.xlu0.b32.start [1/16] %v671, 128
        %891 = vxpose.xlu0.b32.cont [2/16] %v674, 128
        %892 = vxpose.xlu0.b32.cont [3/16] 0.0, 128
        %893 = vxpose.xlu0.b32.cont [4/16] 0.0, 128
        %894 = vxpose.xlu0.b32.cont [5/16] 0.0, 128
        %895 = vxpose.xlu0.b32.cont [6/16] 0.0, 128
        %896 = vxpose.xlu0.b32.cont [7/16] 0.0, 128
        %897 = vxpose.xlu0.b32.cont [8/16] 0.0, 128
        %898 = vxpose.xlu0.b32.cont [9/16] 0.0, 128
        %899 = vxpose.xlu0.b32.cont [10/16] 0.0, 128
        %900 = vxpose.xlu0.b32.cont [11/16] 0.0, 128
        %901 = vxpose.xlu0.b32.cont [12/16] 0.0, 128
        %902 = vxpose.xlu0.b32.cont [13/16] 0.0, 128
        %903 = vxpose.xlu0.b32.cont [14/16] 0.0, 128
        %904 = vxpose.xlu0.b32.cont [15/16] 0.0, 128
        %905 = vxpose.xlu0.b32.end [16/16] 0.0, 128
        %v906 = vpop.trf.xlu0
        %v907 = vpop.trf.xlu0
        %v908 = vpop.trf.xlu0
        %v909 = vpop.trf.xlu0
        %v910 = vpop.trf.xlu0
        %v911 = vpop.trf.xlu0
        %v912 = vpop.trf.xlu0
        %v913 = vpop.trf.xlu0
        %v914 = vpop.trf.xlu0
        %v915 = vpop.trf.xlu0
        %v916 = vpop.trf.xlu0
        %v917 = vpop.trf.xlu0
        %v918 = vpop.trf.xlu0
        %v919 = vpop.trf.xlu0
        %v920 = vpop.trf.xlu0
        %v921 = vpop.trf.xlu0
        %922 = vxpose.xlu0.b32.start [1/16] %v677, 128
        %923 = vxpose.xlu0.b32.cont [2/16] %v680, 128
        %924 = vxpose.xlu0.b32.cont [3/16] 0.0, 128
        %925 = vxpose.xlu0.b32.cont [4/16] 0.0, 128
        %926 = vxpose.xlu0.b32.cont [5/16] 0.0, 128
        %927 = vxpose.xlu0.b32.cont [6/16] 0.0, 128
        %928 = vxpose.xlu0.b32.cont [7/16] 0.0, 128
        %929 = vxpose.xlu0.b32.cont [8/16] 0.0, 128
        %930 = vxpose.xlu0.b32.cont [9/16] 0.0, 128
        %931 = vxpose.xlu0.b32.cont [10/16] 0.0, 128
        %932 = vxpose.xlu0.b32.cont [11/16] 0.0, 128
        %933 = vxpose.xlu0.b32.cont [12/16] 0.0, 128
        %934 = vxpose.xlu0.b32.cont [13/16] 0.0, 128
        %935 = vxpose.xlu0.b32.cont [14/16] 0.0, 128
        %936 = vxpose.xlu0.b32.cont [15/16] 0.0, 128
        %937 = vxpose.xlu0.b32.end [16/16] 0.0, 128
        %v938 = vpop.trf.xlu0
        %v939 = vpop.trf.xlu0
        %v940 = vpop.trf.xlu0
        %v941 = vpop.trf.xlu0
        %v942 = vpop.trf.xlu0
        %v943 = vpop.trf.xlu0
        %v944 = vpop.trf.xlu0
        %v945 = vpop.trf.xlu0
        %v946 = vpop.trf.xlu0
        %v947 = vpop.trf.xlu0
        %v948 = vpop.trf.xlu0
        %v949 = vpop.trf.xlu0
        %v950 = vpop.trf.xlu0
        %v951 = vpop.trf.xlu0
        %v952 = vpop.trf.xlu0
        %v953 = vpop.trf.xlu0
        %954 = vxpose.xlu0.b32.start [1/16] %v683, 128
        %955 = vxpose.xlu0.b32.cont [2/16] %v686, 128
        %956 = vxpose.xlu0.b32.cont [3/16] 0.0, 128
        %957 = vxpose.xlu0.b32.cont [4/16] 0.0, 128
        %958 = vxpose.xlu0.b32.cont [5/16] 0.0, 128
        %959 = vxpose.xlu0.b32.cont [6/16] 0.0, 128
        %960 = vxpose.xlu0.b32.cont [7/16] 0.0, 128
        %961 = vxpose.xlu0.b32.cont [8/16] 0.0, 128
        %962 = vxpose.xlu0.b32.cont [9/16] 0.0, 128
        %963 = vxpose.xlu0.b32.cont [10/16] 0.0, 128
        %964 = vxpose.xlu0.b32.cont [11/16] 0.0, 128
        %965 = vxpose.xlu0.b32.cont [12/16] 0.0, 128
        %966 = vxpose.xlu0.b32.cont [13/16] 0.0, 128
        %967 = vxpose.xlu0.b32.cont [14/16] 0.0, 128
        %968 = vxpose.xlu0.b32.cont [15/16] 0.0, 128
        %969 = vxpose.xlu0.b32.end [16/16] 0.0, 128
        %v970 = vpop.trf.xlu0
        %v971 = vpop.trf.xlu0
        %v972 = vpop.trf.xlu0
        %v973 = vpop.trf.xlu0
        %v974 = vpop.trf.xlu0
        %v975 = vpop.trf.xlu0
        %v976 = vpop.trf.xlu0
        %v977 = vpop.trf.xlu0
        %v978 = vpop.trf.xlu0
        %v979 = vpop.trf.xlu0
        %v980 = vpop.trf.xlu0
        %v981 = vpop.trf.xlu0
        %v982 = vpop.trf.xlu0
        %v983 = vpop.trf.xlu0
        %v984 = vpop.trf.xlu0
        %v985 = vpop.trf.xlu0
        %986 = vxpose.xlu0.b32.start [1/16] %v689, 128
        %987 = vxpose.xlu0.b32.cont [2/16] %v692, 128
        %988 = vxpose.xlu0.b32.cont [3/16] 0.0, 128
        %989 = vxpose.xlu0.b32.cont [4/16] 0.0, 128
        %990 = vxpose.xlu0.b32.cont [5/16] 0.0, 128
        %991 = vxpose.xlu0.b32.cont [6/16] 0.0, 128
        %992 = vxpose.xlu0.b32.cont [7/16] 0.0, 128
        %993 = vxpose.xlu0.b32.cont [8/16] 0.0, 128
        %994 = vxpose.xlu0.b32.cont [9/16] 0.0, 128
        %995 = vxpose.xlu0.b32.cont [10/16] 0.0, 128
        %996 = vxpose.xlu0.b32.cont [11/16] 0.0, 128
        %997 = vxpose.xlu0.b32.cont [12/16] 0.0, 128
        %998 = vxpose.xlu0.b32.cont [13/16] 0.0, 128
        %999 = vxpose.xlu0.b32.cont [14/16] 0.0, 128
        %1000 = vxpose.xlu0.b32.cont [15/16] 0.0, 128
        %1001 = vxpose.xlu0.b32.end [16/16] 0.0, 128
        %v1002 = vpop.trf.xlu0
        %v1003 = vpop.trf.xlu0
        %v1004 = vpop.trf.xlu0
        %v1005 = vpop.trf.xlu0
        %v1006 = vpop.trf.xlu0
        %v1007 = vpop.trf.xlu0
        %v1008 = vpop.trf.xlu0
        %v1009 = vpop.trf.xlu0
        %v1010 = vpop.trf.xlu0
        %v1011 = vpop.trf.xlu0
        %v1012 = vpop.trf.xlu0
        %v1013 = vpop.trf.xlu0
        %v1014 = vpop.trf.xlu0
        %v1015 = vpop.trf.xlu0
        %v1016 = vpop.trf.xlu0
        %v1017 = vpop.trf.xlu0
        %1018 = vxpose.xlu0.b32.start [1/16] %v695, 128
        %1019 = vxpose.xlu0.b32.cont [2/16] %v698, 128
        %1020 = vxpose.xlu0.b32.cont [3/16] 0.0, 128
        %1021 = vxpose.xlu0.b32.cont [4/16] 0.0, 128
        %1022 = vxpose.xlu0.b32.cont [5/16] 0.0, 128
        %1023 = vxpose.xlu0.b32.cont [6/16] 0.0, 128
        %1024 = vxpose.xlu0.b32.cont [7/16] 0.0, 128
        %1025 = vxpose.xlu0.b32.cont [8/16] 0.0, 128
        %1026 = vxpose.xlu0.b32.cont [9/16] 0.0, 128
        %1027 = vxpose.xlu0.b32.cont [10/16] 0.0, 128
        %1028 = vxpose.xlu0.b32.cont [11/16] 0.0, 128
        %1029 = vxpose.xlu0.b32.cont [12/16] 0.0, 128
        %1030 = vxpose.xlu0.b32.cont [13/16] 0.0, 128
        %1031 = vxpose.xlu0.b32.cont [14/16] 0.0, 128
        %1032 = vxpose.xlu0.b32.cont [15/16] 0.0, 128
        %1033 = vxpose.xlu0.b32.end [16/16] 0.0, 128
        %v1034 = vpop.trf.xlu0
        %v1035 = vpop.trf.xlu0
        %v1036 = vpop.trf.xlu0
        %v1037 = vpop.trf.xlu0
        %v1038 = vpop.trf.xlu0
        %v1039 = vpop.trf.xlu0
        %v1040 = vpop.trf.xlu0
        %v1041 = vpop.trf.xlu0
        %v1042 = vpop.trf.xlu0
        %v1043 = vpop.trf.xlu0
        %v1044 = vpop.trf.xlu0
        %v1045 = vpop.trf.xlu0
        %v1046 = vpop.trf.xlu0
        %v1047 = vpop.trf.xlu0
        %v1048 = vpop.trf.xlu0
        %v1049 = vpop.trf.xlu0
        %1050 = vxpose.xlu0.b32.start [1/16] %v701, 128
        %1051 = vxpose.xlu0.b32.cont [2/16] %v704, 128
        %1052 = vxpose.xlu0.b32.cont [3/16] 0.0, 128
        %1053 = vxpose.xlu0.b32.cont [4/16] 0.0, 128
        %1054 = vxpose.xlu0.b32.cont [5/16] 0.0, 128
        %1055 = vxpose.xlu0.b32.cont [6/16] 0.0, 128
        %1056 = vxpose.xlu0.b32.cont [7/16] 0.0, 128
        %1057 = vxpose.xlu0.b32.cont [8/16] 0.0, 128
        %1058 = vxpose.xlu0.b32.cont [9/16] 0.0, 128
        %1059 = vxpose.xlu0.b32.cont [10/16] 0.0, 128
        %1060 = vxpose.xlu0.b32.cont [11/16] 0.0, 128
        %1061 = vxpose.xlu0.b32.cont [12/16] 0.0, 128
        %1062 = vxpose.xlu0.b32.cont [13/16] 0.0, 128
        %1063 = vxpose.xlu0.b32.cont [14/16] 0.0, 128
        %1064 = vxpose.xlu0.b32.cont [15/16] 0.0, 128
        %1065 = vxpose.xlu0.b32.end [16/16] 0.0, 128
        %v1066 = vpop.trf.xlu0
        %v1067 = vpop.trf.xlu0
        %v1068 = vpop.trf.xlu0
        %v1069 = vpop.trf.xlu0
        %v1070 = vpop.trf.xlu0
        %v1071 = vpop.trf.xlu0
        %v1072 = vpop.trf.xlu0
        %v1073 = vpop.trf.xlu0
        %v1074 = vpop.trf.xlu0
        %v1075 = vpop.trf.xlu0
        %v1076 = vpop.trf.xlu0
        %v1077 = vpop.trf.xlu0
        %v1078 = vpop.trf.xlu0
        %v1079 = vpop.trf.xlu0
        %v1080 = vpop.trf.xlu0
        %v1081 = vpop.trf.xlu0
        %1082 = vxpose.xlu0.b32.start [1/16] %v707, 128
        %1083 = vxpose.xlu0.b32.cont [2/16] %v710, 128
        %1084 = vxpose.xlu0.b32.cont [3/16] 0.0, 128
        %1085 = vxpose.xlu0.b32.cont [4/16] 0.0, 128
        %1086 = vxpose.xlu0.b32.cont [5/16] 0.0, 128
        %1087 = vxpose.xlu0.b32.cont [6/16] 0.0, 128
        %1088 = vxpose.xlu0.b32.cont [7/16] 0.0, 128
        %1089 = vxpose.xlu0.b32.cont [8/16] 0.0, 128
        %1090 = vxpose.xlu0.b32.cont [9/16] 0.0, 128
        %1091 = vxpose.xlu0.b32.cont [10/16] 0.0, 128
        %1092 = vxpose.xlu0.b32.cont [11/16] 0.0, 128
        %1093 = vxpose.xlu0.b32.cont [12/16] 0.0, 128
        %1094 = vxpose.xlu0.b32.cont [13/16] 0.0, 128
        %1095 = vxpose.xlu0.b32.cont [14/16] 0.0, 128
        %1096 = vxpose.xlu0.b32.cont [15/16] 0.0, 128
        %1097 = vxpose.xlu0.b32.end [16/16] 0.0, 128
        %v1098 = vpop.trf.xlu0
        %v1099 = vpop.trf.xlu0
        %v1100 = vpop.trf.xlu0
        %v1101 = vpop.trf.xlu0
        %v1102 = vpop.trf.xlu0
        %v1103 = vpop.trf.xlu0
        %v1104 = vpop.trf.xlu0
        %v1105 = vpop.trf.xlu0
        %v1106 = vpop.trf.xlu0
        %v1107 = vpop.trf.xlu0
        %v1108 = vpop.trf.xlu0
        %v1109 = vpop.trf.xlu0
        %v1110 = vpop.trf.xlu0
        %v1111 = vpop.trf.xlu0
        %v1112 = vpop.trf.xlu0
        %v1113 = vpop.trf.xlu0
        %1114 = vxpose.xlu0.b32.start [1/16] %v713, 128
        %1115 = vxpose.xlu0.b32.cont [2/16] %v716, 128
        %1116 = vxpose.xlu0.b32.cont [3/16] 0.0, 128
        %1117 = vxpose.xlu0.b32.cont [4/16] 0.0, 128
        %1118 = vxpose.xlu0.b32.cont [5/16] 0.0, 128
        %1119 = vxpose.xlu0.b32.cont [6/16] 0.0, 128
        %1120 = vxpose.xlu0.b32.cont [7/16] 0.0, 128
        %1121 = vxpose.xlu0.b32.cont [8/16] 0.0, 128
        %1122 = vxpose.xlu0.b32.cont [9/16] 0.0, 128
        %1123 = vxpose.xlu0.b32.cont [10/16] 0.0, 128
        %1124 = vxpose.xlu0.b32.cont [11/16] 0.0, 128
        %1125 = vxpose.xlu0.b32.cont [12/16] 0.0, 128
        %1126 = vxpose.xlu0.b32.cont [13/16] 0.0, 128
        %1127 = vxpose.xlu0.b32.cont [14/16] 0.0, 128
        %1128 = vxpose.xlu0.b32.cont [15/16] 0.0, 128
        %1129 = vxpose.xlu0.b32.end [16/16] 0.0, 128
        %v1130 = vpop.trf.xlu0
        %v1131 = vpop.trf.xlu0
        %v1132 = vpop.trf.xlu0
        %v1133 = vpop.trf.xlu0
        %v1134 = vpop.trf.xlu0
        %v1135 = vpop.trf.xlu0
        %v1136 = vpop.trf.xlu0
        %v1137 = vpop.trf.xlu0
        %v1138 = vpop.trf.xlu0
        %v1139 = vpop.trf.xlu0
        %v1140 = vpop.trf.xlu0
        %v1141 = vpop.trf.xlu0
        %v1142 = vpop.trf.xlu0
        %v1143 = vpop.trf.xlu0
        %v1144 = vpop.trf.xlu0
        %v1145 = vpop.trf.xlu0
        %1146 = vxpose.xlu0.b32.start [1/16] %v719, 128
        %1147 = vxpose.xlu0.b32.cont [2/16] %v722, 128
        %1148 = vxpose.xlu0.b32.cont [3/16] 0.0, 128
        %1149 = vxpose.xlu0.b32.cont [4/16] 0.0, 128
        %1150 = vxpose.xlu0.b32.cont [5/16] 0.0, 128
        %1151 = vxpose.xlu0.b32.cont [6/16] 0.0, 128
        %1152 = vxpose.xlu0.b32.cont [7/16] 0.0, 128
        %1153 = vxpose.xlu0.b32.cont [8/16] 0.0, 128
        %1154 = vxpose.xlu0.b32.cont [9/16] 0.0, 128
        %1155 = vxpose.xlu0.b32.cont [10/16] 0.0, 128
        %1156 = vxpose.xlu0.b32.cont [11/16] 0.0, 128
        %1157 = vxpose.xlu0.b32.cont [12/16] 0.0, 128
        %1158 = vxpose.xlu0.b32.cont [13/16] 0.0, 128
        %1159 = vxpose.xlu0.b32.cont [14/16] 0.0, 128
        %1160 = vxpose.xlu0.b32.cont [15/16] 0.0, 128
        %1161 = vxpose.xlu0.b32.end [16/16] 0.0, 128
        %v1162 = vpop.trf.xlu0
        %v1163 = vpop.trf.xlu0
        %v1164 = vpop.trf.xlu0
        %v1165 = vpop.trf.xlu0
        %v1166 = vpop.trf.xlu0
        %v1167 = vpop.trf.xlu0
        %v1168 = vpop.trf.xlu0
        %v1169 = vpop.trf.xlu0
        %v1170 = vpop.trf.xlu0
        %v1171 = vpop.trf.xlu0
        %v1172 = vpop.trf.xlu0
        %v1173 = vpop.trf.xlu0
        %v1174 = vpop.trf.xlu0
        %v1175 = vpop.trf.xlu0
        %v1176 = vpop.trf.xlu0
        %v1177 = vpop.trf.xlu0
        %1178 = vxpose.xlu0.b32.start [1/16] %v725, 128
        %1179 = vxpose.xlu0.b32.cont [2/16] %v728, 128
        %1180 = vxpose.xlu0.b32.cont [3/16] 0.0, 128
        %1181 = vxpose.xlu0.b32.cont [4/16] 0.0, 128
        %1182 = vxpose.xlu0.b32.cont [5/16] 0.0, 128
        %1183 = vxpose.xlu0.b32.cont [6/16] 0.0, 128
        %1184 = vxpose.xlu0.b32.cont [7/16] 0.0, 128
        %1185 = vxpose.xlu0.b32.cont [8/16] 0.0, 128
        %1186 = vxpose.xlu0.b32.cont [9/16] 0.0, 128
        %1187 = vxpose.xlu0.b32.cont [10/16] 0.0, 128
        %1188 = vxpose.xlu0.b32.cont [11/16] 0.0, 128
        %1189 = vxpose.xlu0.b32.cont [12/16] 0.0, 128
        %1190 = vxpose.xlu0.b32.cont [13/16] 0.0, 128
        %1191 = vxpose.xlu0.b32.cont [14/16] 0.0, 128
        %1192 = vxpose.xlu0.b32.cont [15/16] 0.0, 128
        %1193 = vxpose.xlu0.b32.end [16/16] 0.0, 128
        %v1194 = vpop.trf.xlu0
        %v1195 = vpop.trf.xlu0
        %v1196 = vpop.trf.xlu0
        %v1197 = vpop.trf.xlu0
        %v1198 = vpop.trf.xlu0
        %v1199 = vpop.trf.xlu0
        %v1200 = vpop.trf.xlu0
        %v1201 = vpop.trf.xlu0
        %v1202 = vpop.trf.xlu0
        %v1203 = vpop.trf.xlu0
        %v1204 = vpop.trf.xlu0
        %v1205 = vpop.trf.xlu0
        %v1206 = vpop.trf.xlu0
        %v1207 = vpop.trf.xlu0
        %v1208 = vpop.trf.xlu0
        %v1209 = vpop.trf.xlu0
        %v1211 = vsel %vm367, %v746, 0
        %v1214 = vsel %vm367, %v747, 0
        %v1217 = vsel %vm367, %v778, 0
        %v1220 = vsel %vm367, %v779, 0
        %v1223 = vsel %vm367, %v810, 0
        %v1226 = vsel %vm367, %v811, 0
        %v1229 = vsel %vm367, %v842, 0
        %v1232 = vsel %vm367, %v843, 0
        %v1235 = vsel %vm367, %v874, 0
        %v1238 = vsel %vm367, %v875, 0
        %v1241 = vsel %vm367, %v906, 0
        %v1244 = vsel %vm367, %v907, 0
        %v1247 = vsel %vm367, %v938, 0
        %v1250 = vsel %vm367, %v939, 0
        %v1253 = vsel %vm367, %v970, 0
        %v1256 = vsel %vm367, %v971, 0
        %v1259 = vsel %vm367, %v1002, 0
        %v1262 = vsel %vm367, %v1003, 0
        %v1265 = vsel %vm367, %v1034, 0
        %v1268 = vsel %vm367, %v1035, 0
        %v1271 = vsel %vm367, %v1066, 0
        %v1274 = vsel %vm367, %v1067, 0
        %v1277 = vsel %vm367, %v1098, 0
        %v1280 = vsel %vm367, %v1099, 0
        %v1283 = vsel %vm367, %v1130, 0
        %v1286 = vsel %vm367, %v1131, 0
        %v1289 = vsel %vm367, %v1162, 0
        %v1292 = vsel %vm367, %v1163, 0
        %v1295 = vsel %vm367, %v1194, 0
        %v1298 = vsel %vm367, %v1195, 0
        %1300 = vmatpush.msra.mxu0 0.0
        %1301 = vmatpush.msra.mxu0 0.0
        %1302 = vmatpush.msra.mxu0 0.0
        %1303 = vmatpush.msra.mxu0 0.0
        %1304 = vmatpush.msra.mxu0 0.0
        %1305 = vmatpush.msra.mxu0 0.0
        %1306 = vmatpush.msra.mxu0 0.0
        %1307 = vmatpush.msra.mxu0 0.0
        %1308 = vmatpush.msra.mxu0 0.0
        %1309 = vmatpush.msra.mxu0 0.0
        %1310 = vmatpush.msra.mxu0 0.0
        %1311 = vmatpush.msra.mxu0 0.0
        %1312 = vmatpush.msra.mxu0 0.0
        %1313 = vmatpush.msra.mxu0 0.0
        %1314 = vmatpush.msra.mxu0 %v330
        %1315 = vmatpush.msra.mxu0 %v329
        %1316 = vmatmul.f32.gmra.mxu0 %v1211
        %v1317 = vpop.f32.mrf.mxu0
        %v1318 = vadd.f32 0.0, %v1317
        %1319 = vmatmul.f32.gmra.mxu0 %v1214
        %v1320 = vpop.f32.mrf.mxu0
        %v1321 = vadd.f32 0.0, %v1320
        %1322 = vmatmul.f32.gmra.mxu0 %v1217
        %v1323 = vpop.f32.mrf.mxu0
        %v1324 = vadd.f32 0.0, %v1323
        %1325 = vmatmul.f32.gmra.mxu0 %v1220
        %v1326 = vpop.f32.mrf.mxu0
        %v1327 = vadd.f32 0.0, %v1326
        %1328 = vmatmul.f32.gmra.mxu0 %v1223
        %v1329 = vpop.f32.mrf.mxu0
        %v1330 = vadd.f32 0.0, %v1329
        %1331 = vmatmul.f32.gmra.mxu0 %v1226
        %v1332 = vpop.f32.mrf.mxu0
        %v1333 = vadd.f32 0.0, %v1332
        %1334 = vmatmul.f32.gmra.mxu0 %v1229
        %v1335 = vpop.f32.mrf.mxu0
        %v1336 = vadd.f32 0.0, %v1335
        %1337 = vmatmul.f32.gmra.mxu0 %v1232
        %v1338 = vpop.f32.mrf.mxu0
        %v1339 = vadd.f32 0.0, %v1338
        %1340 = vmatmul.f32.gmra.mxu0 %v1235
        %v1341 = vpop.f32.mrf.mxu0
        %v1342 = vadd.f32 0.0, %v1341
        %1343 = vmatmul.f32.gmra.mxu0 %v1238
        %v1344 = vpop.f32.mrf.mxu0
        %v1345 = vadd.f32 0.0, %v1344
        %1346 = vmatmul.f32.gmra.mxu0 %v1241
        %v1347 = vpop.f32.mrf.mxu0
        %v1348 = vadd.f32 0.0, %v1347
        %1349 = vmatmul.f32.gmra.mxu0 %v1244
        %v1350 = vpop.f32.mrf.mxu0
        %v1351 = vadd.f32 0.0, %v1350
        %1352 = vmatmul.f32.gmra.mxu0 %v1247
        %v1353 = vpop.f32.mrf.mxu0
        %v1354 = vadd.f32 0.0, %v1353
        %1355 = vmatmul.f32.gmra.mxu0 %v1250
        %v1356 = vpop.f32.mrf.mxu0
        %v1357 = vadd.f32 0.0, %v1356
        %1358 = vmatmul.f32.gmra.mxu0 %v1253
        %v1359 = vpop.f32.mrf.mxu0
        %v1360 = vadd.f32 0.0, %v1359
        %1361 = vmatmul.f32.gmra.mxu0 %v1256
        %v1362 = vpop.f32.mrf.mxu0
        %v1363 = vadd.f32 0.0, %v1362
        %1364 = vmatmul.f32.gmra.mxu0 %v1259
        %v1365 = vpop.f32.mrf.mxu0
        %v1366 = vadd.f32 0.0, %v1365
        %1367 = vmatmul.f32.gmra.mxu0 %v1262
        %v1368 = vpop.f32.mrf.mxu0
        %v1369 = vadd.f32 0.0, %v1368
        %1370 = vmatmul.f32.gmra.mxu0 %v1265
        %v1371 = vpop.f32.mrf.mxu0
        %v1372 = vadd.f32 0.0, %v1371
        %1373 = vmatmul.f32.gmra.mxu0 %v1268
        %v1374 = vpop.f32.mrf.mxu0
        %v1375 = vadd.f32 0.0, %v1374
        %1376 = vmatmul.f32.gmra.mxu0 %v1271
        %v1377 = vpop.f32.mrf.mxu0
        %v1378 = vadd.f32 0.0, %v1377
        %1379 = vmatmul.f32.gmra.mxu0 %v1274
        %v1380 = vpop.f32.mrf.mxu0
        %v1381 = vadd.f32 0.0, %v1380
        %1382 = vmatmul.f32.gmra.mxu0 %v1277
        %v1383 = vpop.f32.mrf.mxu0
        %v1384 = vadd.f32 0.0, %v1383
        %1385 = vmatmul.f32.gmra.mxu0 %v1280
        %v1386 = vpop.f32.mrf.mxu0
        %v1387 = vadd.f32 0.0, %v1386
        %1388 = vmatmul.f32.gmra.mxu0 %v1283
        %v1389 = vpop.f32.mrf.mxu0
        %v1390 = vadd.f32 0.0, %v1389
        %1391 = vmatmul.f32.gmra.mxu0 %v1286
        %v1392 = vpop.f32.mrf.mxu0
        %v1393 = vadd.f32 0.0, %v1392
        %1394 = vmatmul.f32.gmra.mxu0 %v1289
        %v1395 = vpop.f32.mrf.mxu0
        %v1396 = vadd.f32 0.0, %v1395
        %1397 = vmatmul.f32.gmra.mxu0 %v1292
        %v1398 = vpop.f32.mrf.mxu0
        %v1399 = vadd.f32 0.0, %v1398
        %1400 = vmatmul.f32.gmra.mxu0 %v1295
        %v1401 = vpop.f32.mrf.mxu0
        %v1402 = vadd.f32 0.0, %v1401
        %1403 = vmatmul.f32.gmra.mxu0 %v1298
        %v1404 = vpop.f32.mrf.mxu0
        %v1405 = vadd.f32 0.0, %v1404
        %1406 = vdwg.mxu0
        %v1407 = vmul.f32 %v1318, %v1318
        %v1408 = vmul.f32 %v1321, %v1321
        %v1409 = vmul.f32 %v1324, %v1324
        %v1410 = vmul.f32 %v1327, %v1327
        %v1411 = vmul.f32 %v1330, %v1330
        %v1412 = vmul.f32 %v1333, %v1333
        %v1413 = vmul.f32 %v1336, %v1336
        %v1414 = vmul.f32 %v1339, %v1339
        %v1415 = vmul.f32 %v1342, %v1342
        %v1416 = vmul.f32 %v1345, %v1345
        %v1417 = vmul.f32 %v1348, %v1348
        %v1418 = vmul.f32 %v1351, %v1351
        %v1419 = vmul.f32 %v1318, %v1336
        %v1420 = vmul.f32 %v1321, %v1339
        %v1421 = vmul.f32 %v1324, %v1342
        %v1422 = vmul.f32 %v1327, %v1345
        %v1423 = vmul.f32 %v1330, %v1348
        %v1424 = vmul.f32 %v1333, %v1351
        %v1425 = vsub.f32 %v1354, %v1407
        %v1426 = vsub.f32 %v1357, %v1408
        %v1427 = vsub.f32 %v1360, %v1409
        %v1428 = vsub.f32 %v1363, %v1410
        %v1429 = vsub.f32 %v1366, %v1411
        %v1430 = vsub.f32 %v1369, %v1412
        %v1431 = vsub.f32 %v1372, %v1413
        %v1432 = vsub.f32 %v1375, %v1414
        %v1433 = vsub.f32 %v1378, %v1415
        %v1434 = vsub.f32 %v1381, %v1416
        %v1435 = vsub.f32 %v1384, %v1417
        %v1436 = vsub.f32 %v1387, %v1418
        %v1437 = vsub.f32 %v1390, %v1419
        %v1438 = vsub.f32 %v1393, %v1420
        %v1439 = vsub.f32 %v1396, %v1421
        %v1440 = vsub.f32 %v1399, %v1422
        %v1441 = vsub.f32 %v1402, %v1423
        %v1442 = vsub.f32 %v1405, %v1424
        %v1443 = vmul.f32 %v1419, 2.0
        %v1444 = vmul.f32 %v1420, 2.0
        %v1445 = vmul.f32 %v1421, 2.0
        %v1446 = vmul.f32 %v1422, 2.0
        %v1447 = vmul.f32 %v1423, 2.0
        %v1448 = vmul.f32 %v1424, 2.0
        %v1449 = vadd.f32 %v1443, 0.0001
        %v1450 = vadd.f32 %v1444, 0.0001
        %v1451 = vadd.f32 %v1445, 0.0001
        %v1452 = vadd.f32 %v1446, 0.0001
        %v1453 = vadd.f32 %v1447, 0.0001
        %v1454 = vadd.f32 %v1448, 0.0001
        %v1455 = vmul.f32 %v1437, 2.0
        %v1456 = vmul.f32 %v1438, 2.0
        %v1457 = vmul.f32 %v1439, 2.0
        %v1458 = vmul.f32 %v1440, 2.0
        %v1459 = vmul.f32 %v1441, 2.0
        %v1460 = vmul.f32 %v1442, 2.0
        %v1461 = vadd.f32 %v1455, 0.0009
        %v1462 = vadd.f32 %v1456, 0.0009
        %v1463 = vadd.f32 %v1457, 0.0009
        %v1464 = vadd.f32 %v1458, 0.0009
        %v1465 = vadd.f32 %v1459, 0.0009
        %v1466 = vadd.f32 %v1460, 0.0009
        %v1467 = vmul.f32 %v1449, %v1461
        %v1468 = vmul.f32 %v1450, %v1462
        %v1469 = vmul.f32 %v1451, %v1463
        %v1470 = vmul.f32 %v1452, %v1464
        %v1471 = vmul.f32 %v1453, %v1465
        %v1472 = vmul.f32 %v1454, %v1466
        %v1473 = vadd.f32 %v1407, %v1413
        %v1474 = vadd.f32 %v1408, %v1414
        %v1475 = vadd.f32 %v1409, %v1415
        %v1476 = vadd.f32 %v1410, %v1416
        %v1477 = vadd.f32 %v1411, %v1417
        %v1478 = vadd.f32 %v1412, %v1418
        %v1479 = vadd.f32 %v1473, 0.0001
        %v1480 = vadd.f32 %v1474, 0.0001
        %v1481 = vadd.f32 %v1475, 0.0001
        %v1482 = vadd.f32 %v1476, 0.0001
        %v1483 = vadd.f32 %v1477, 0.0001
        %v1484 = vadd.f32 %v1478, 0.0001
        %v1485 = vadd.f32 %v1425, %v1431
        %v1486 = vadd.f32 %v1426, %v1432
        %v1487 = vadd.f32 %v1427, %v1433
        %v1488 = vadd.f32 %v1428, %v1434
        %v1489 = vadd.f32 %v1429, %v1435
        %v1490 = vadd.f32 %v1430, %v1436
        %v1491 = vadd.f32 %v1485, 0.0009
        %v1492 = vadd.f32 %v1486, 0.0009
        %v1493 = vadd.f32 %v1487, 0.0009
        %v1494 = vadd.f32 %v1488, 0.0009
        %v1495 = vadd.f32 %v1489, 0.0009
        %v1496 = vadd.f32 %v1490, 0.0009
        %v1497 = vmul.f32 %v1479, %v1491
        %v1498 = vmul.f32 %v1480, %v1492
        %v1499 = vmul.f32 %v1481, %v1493
        %v1500 = vmul.f32 %v1482, %v1494
        %v1501 = vmul.f32 %v1483, %v1495
        %v1502 = vmul.f32 %v1484, %v1496
        %v1503 = vrcp.pop %v1497
        %v1504 = vmul.f32 %v1497, %v1503
        %v1505 = vsub.f32 1.0, %v1504
        %v1506 = vmul.f32 %v1503, %v1505
        %v1507 = vadd.f32 %v1503, %v1506
        %vm1508 = vweird.f32 %v1497
        %vm1509 = vweird.f32 %v1503
        %vm1510 = vmor %vm1508, %vm1509
        %v1511 = vsel %vm1510, %v1503, %v1507
        %v1512 = vand.u32 2147483647, %v1497
        %vm1513 = vcmp.eq.f32.partialorder %v1512, 8.507059e+37
        %v1514 = vand.u32 %v1497, 2147483648
        %v1515 = vor.u32 1.1754944e-38, %v1514
        %v1516 = vsel %vm1513, %v1515, %v1511
        %v1517 = vmul.f32 %v1467, %v1516
        %v1518 = vrcp.pop %v1498
        %v1519 = vmul.f32 %v1498, %v1518
        %v1520 = vsub.f32 1.0, %v1519
        %v1521 = vmul.f32 %v1518, %v1520
        %v1522 = vadd.f32 %v1518, %v1521
        %vm1523 = vweird.f32 %v1498
        %vm1524 = vweird.f32 %v1518
        %vm1525 = vmor %vm1523, %vm1524
        %v1526 = vsel %vm1525, %v1518, %v1522
        %v1527 = vand.u32 2147483647, %v1498
        %vm1528 = vcmp.eq.f32.partialorder %v1527, 8.507059e+37
        %v1529 = vand.u32 %v1498, 2147483648
        %v1530 = vor.u32 1.1754944e-38, %v1529
        %v1531 = vsel %vm1528, %v1530, %v1526
        %v1532 = vmul.f32 %v1468, %v1531
        %v1533 = vrcp.pop %v1499
        %v1534 = vmul.f32 %v1499, %v1533
        %v1535 = vsub.f32 1.0, %v1534
        %v1536 = vmul.f32 %v1533, %v1535
        %v1537 = vadd.f32 %v1533, %v1536
        %vm1538 = vweird.f32 %v1499
        %vm1539 = vweird.f32 %v1533
        %vm1540 = vmor %vm1538, %vm1539
        %v1541 = vsel %vm1540, %v1533, %v1537
        %v1542 = vand.u32 2147483647, %v1499
        %vm1543 = vcmp.eq.f32.partialorder %v1542, 8.507059e+37
        %v1544 = vand.u32 %v1499, 2147483648
        %v1545 = vor.u32 1.1754944e-38, %v1544
        %v1546 = vsel %vm1543, %v1545, %v1541
        %v1547 = vmul.f32 %v1469, %v1546
        %v1548 = vrcp.pop %v1500
        %v1549 = vmul.f32 %v1500, %v1548
        %v1550 = vsub.f32 1.0, %v1549
        %v1551 = vmul.f32 %v1548, %v1550
        %v1552 = vadd.f32 %v1548, %v1551
        %vm1553 = vweird.f32 %v1500
        %vm1554 = vweird.f32 %v1548
        %vm1555 = vmor %vm1553, %vm1554
        %v1556 = vsel %vm1555, %v1548, %v1552
        %v1557 = vand.u32 2147483647, %v1500
        %vm1558 = vcmp.eq.f32.partialorder %v1557, 8.507059e+37
        %v1559 = vand.u32 %v1500, 2147483648
        %v1560 = vor.u32 1.1754944e-38, %v1559
        %v1561 = vsel %vm1558, %v1560, %v1556
        %v1562 = vmul.f32 %v1470, %v1561
        %v1563 = vrcp.pop %v1501
        %v1564 = vmul.f32 %v1501, %v1563
        %v1565 = vsub.f32 1.0, %v1564
        %v1566 = vmul.f32 %v1563, %v1565
        %v1567 = vadd.f32 %v1563, %v1566
        %vm1568 = vweird.f32 %v1501
        %vm1569 = vweird.f32 %v1563
        %vm1570 = vmor %vm1568, %vm1569
        %v1571 = vsel %vm1570, %v1563, %v1567
        %v1572 = vand.u32 2147483647, %v1501
        %vm1573 = vcmp.eq.f32.partialorder %v1572, 8.507059e+37
        %v1574 = vand.u32 %v1501, 2147483648
        %v1575 = vor.u32 1.1754944e-38, %v1574
        %v1576 = vsel %vm1573, %v1575, %v1571
        %v1577 = vmul.f32 %v1471, %v1576
        %v1578 = vrcp.pop %v1502
        %v1579 = vmul.f32 %v1502, %v1578
        %v1580 = vsub.f32 1.0, %v1579
        %v1581 = vmul.f32 %v1578, %v1580
        %v1582 = vadd.f32 %v1578, %v1581
        %vm1583 = vweird.f32 %v1502
        %vm1584 = vweird.f32 %v1578
        %vm1585 = vmor %vm1583, %vm1584
        %v1586 = vsel %vm1585, %v1578, %v1582
        %v1587 = vand.u32 2147483647, %v1502
        %vm1588 = vcmp.eq.f32.partialorder %v1587, 8.507059e+37
        %v1589 = vand.u32 %v1502, 2147483648
        %v1590 = vor.u32 1.1754944e-38, %v1589
        %v1591 = vsel %vm1588, %v1590, %v1586
        %v1592 = vmul.f32 %v1472, %v1591
        %v1593 = vsel %vm367, %v1517, 0.0
        %v1594 = vsel %vm367, %v1532, 0.0
        %v1595 = vadd.f32 %v1593, %v1594
        %v1596 = vsel %vm367, %v1547, 0.0
        %v1597 = vadd.f32 %v1595, %v1596
        %v1598 = vsel %vm367, %v1562, 0.0
        %v1599 = vadd.f32 %v1597, %v1598
        %v1600 = vsel %vm367, %v1577, 0.0
        %v1601 = vadd.f32 %v1599, %v1600
        %v1602 = vsel %vm367, %v1592, 0.0
        %v1603 = vadd.f32 %v1601, %v1602
        %1604 = vadd.xlane.f32.xlu0 %v1603
        %v1605 = vpop.xlane.xlu0 %1604
        %v1606 = vrot.slane %v1605, 4
        %v1607 = vadd.f32 %v1605, %v1606
        %v1608 = vrot.slane %v1607, 2
        %v1609 = vadd.f32 %v1607, %v1608
        %v1610 = vrot.slane %v1609, 1
        %v1611 = vadd.f32 %v1609, %v1610
        %s1612 = vtos %v1611
        %s1613 = smul.f32 %s1612, 0.0013020834
        %1614 = vxpose.xlu0.b32.start [1/16] %v327, 128
        %1615 = vxpose.xlu0.b32.cont [2/16] %v328, 128
        %1616 = vxpose.xlu0.b32.cont [3/16] 0.0, 128
        %1617 = vxpose.xlu0.b32.cont [4/16] 0.0, 128
        %1618 = vxpose.xlu0.b32.cont [5/16] 0.0, 128
        %1619 = vxpose.xlu0.b32.cont [6/16] 0.0, 128
        %1620 = vxpose.xlu0.b32.cont [7/16] 0.0, 128
        %1621 = vxpose.xlu0.b32.cont [8/16] 0.0, 128
        %1622 = vxpose.xlu0.b32.cont [9/16] 0.0, 128
        %1623 = vxpose.xlu0.b32.cont [10/16] 0.0, 128
        %1624 = vxpose.xlu0.b32.cont [11/16] 0.0, 128
        %1625 = vxpose.xlu0.b32.cont [12/16] 0.0, 128
        %1626 = vxpose.xlu0.b32.cont [13/16] 0.0, 128
        %1627 = vxpose.xlu0.b32.cont [14/16] 0.0, 128
        %1628 = vxpose.xlu0.b32.cont [15/16] 0.0, 128
        %1629 = vxpose.xlu0.b32.end [16/16] 0.0, 128
        %v1630 = vpop.trf.xlu0
        %v1631 = vpop.trf.xlu0
        %v1632 = vpop.trf.xlu0
        %v1633 = vpop.trf.xlu0
        %v1634 = vpop.trf.xlu0
        %v1635 = vpop.trf.xlu0
        %v1636 = vpop.trf.xlu0
        %v1637 = vpop.trf.xlu0
        %v1638 = vpop.trf.xlu0
        %v1639 = vpop.trf.xlu0
        %v1640 = vpop.trf.xlu0
        %v1641 = vpop.trf.xlu0
        %v1642 = vpop.trf.xlu0
        %v1643 = vpop.trf.xlu0
        %v1644 = vpop.trf.xlu0
        %v1645 = vpop.trf.xlu0
        %v1646 = vmul.f32 %v1517, %v1630
        %v1647 = vmul.f32 %v1532, %v1631
        %v1648 = vmul.f32 %v1547, %v1630
        %v1649 = vmul.f32 %v1562, %v1631
        %v1650 = vmul.f32 %v1577, %v1630
        %v1651 = vmul.f32 %v1592, %v1631
        %v1652 = vsel %vm367, %v1646, 0.0
        %v1653 = vsel %vm367, %v1647, 0.0
        %v1654 = vadd.f32 %v1652, %v1653
        %v1655 = vsel %vm367, %v1648, 0.0
        %v1656 = vadd.f32 %v1654, %v1655
        %v1657 = vsel %vm367, %v1649, 0.0
        %v1658 = vadd.f32 %v1656, %v1657
        %v1659 = vsel %vm367, %v1650, 0.0
        %v1660 = vadd.f32 %v1658, %v1659
        %v1661 = vsel %vm367, %v1651, 0.0
        %v1662 = vadd.f32 %v1660, %v1661
        %1663 = vadd.xlane.f32.xlu0 %v1662
        %v1664 = vpop.xlane.xlu0 %1663
        %v1665 = vrot.slane %v1664, 4
        %v1666 = vadd.f32 %v1664, %v1665
        %v1667 = vrot.slane %v1666, 2
        %v1668 = vadd.f32 %v1666, %v1667
        %v1669 = vrot.slane %v1668, 1
        %v1670 = vadd.f32 %v1668, %v1669
        %s1671 = vtos %v1670
        %s1672 = smul.f32 %s1671, %s396
        %v1673 = vlaneseq
        %v1674 = vand.u32 %v1673, 127
        %vm1675 = vcmp.eq.s32.totalorder %v1674, 0
        %v1676 = vstv %s449
        %v1677 = vsel %vm1675, %v1676, 0.0
        %vm1678 = vcmp.eq.s32.totalorder %v1674, 1
        %v1679 = vstv %s454
        %v1680 = vsel %vm1678, %v1679, %v1677
        %vm1681 = vcmp.eq.s32.totalorder %v1674, 2
        %v1682 = vstv %s1613
        %v1683 = vsel %vm1681, %v1682, %v1680
        %vm1684 = vcmp.eq.s32.totalorder %v1674, 3
        %v1685 = vstv %s1672
        %v1686 = vsel %vm1684, %v1685, %v1683
        %1687 = vst [vmem:[%s314] sm:$0x1] %v1686
        %s1688 = sand.u32 %s132, 1
        %s1689 = scalar_lea.sflag [#allocation5], %s1688
        %s1690 = sand.u32 %s132, 1
        %s1691 = scalar_lea.vmem [#allocation11], %s1690
        // Predicated region
        $region53: #{tpu_custom_call.1} parent=35 // pred_check
          %p1692 = pneg %p142
        $region54: #{tpu_custom_call.1} parent=35 // pred_check_branch
          %1694 = sbr.rel (%p1692) target = $region56
        $region55: #{tpu_custom_call.1} parent=35 // pred_region
          %1696 = vsyncadd %s1689, 0
          %s1697 = scalar_lea.hbm %s4, %s25
          %s1699 = sshll.u32 %s1691, 4
          %s1700 = int_to_ptr.vmem [resolvable:$true] %s1699
          %s1701 = sshll.u32 %s1697, 4
          %s1702 = int_to_ptr.hbm [resolvable:$true] %s1701
          %1704 = dma.vmem_to_hbm [thread:$0]  %s1700, 16, %s1702, %s1689
        $region56: #{tpu_custom_call.1} parent=35 // pred_fallthru
          _
      $region36: #{tpu_custom_call.1} parent=5 // pred_fallthru
        _
      %p1705 = scmp.le.s32.totalorder 2, %s20
      // Predicated region
      $region57: #{tpu_custom_call.1} parent=5 // pred_check
        %p1706 = pneg %p1705
      $region58: #{tpu_custom_call.1} parent=5 // pred_check_branch
        %1708 = sbr.rel (%p1706) target = $region60
      $region59: #{tpu_custom_call.1} parent=5 // pred_region
        %s1709 = ssub.s32 %s20, 2
        // Predicated region
        $region61: #{tpu_custom_call.1} parent=59 // pred_check
          %p1710 = pneg %p148
        $region62: #{tpu_custom_call.1} parent=59 // pred_check_branch
          %1712 = sbr.rel (%p1710) target = $region64
        $region63: #{tpu_custom_call.1} parent=59 // pred_region
          %s1713 = sand.u32 %s133, 1
          %s1714 = scalar_lea.sflag [#allocation5], %s1713
          %s1715 = sand.u32 %s133, 1
          %s1716 = scalar_lea.vmem [#allocation11], %s1715
          %1718 = dma.done %s1714, 16
        $region64: #{tpu_custom_call.1} parent=59 // pred_fallthru
          _
      $region60: #{tpu_custom_call.1} parent=5 // pred_fallthru
        _
    $region6: #{tpu_custom_call.1} parent=1 // loop_footer
      %s24 = sadd.s32 1, %s20
    $region7: #{tpu_custom_call.1} parent=1 // loop_footer_branch
      %19 = sbr.rel target = $region3
    $region8: #{tpu_custom_call.1} parent=1 // loop_exit
      _
    %1719 = vsyncpa [#allocation4], 1
    %s1720 = scalar_lea.sflag [#allocation4], 1
    %1721 = vsyncpa %s1720, 1
    %1722 = vsyncpa [#allocation7], 1
    %s1723 = scalar_lea.sflag [#allocation7], 1
    %1724 = vsyncpa %s1723, 1
    %1725 = vsyncpa [#allocation10], 1
    %s1726 = scalar_lea.sflag [#allocation10], 1
    %1727 = vsyncpa %s1726, 1
    %1728 = vsyncpa [#allocation5], 1
    %s1729 = scalar_lea.sflag [#allocation5], 1
    %1730 = vsyncpa %s1729, 1

</llo_original>
